<compile_context>
chip_gen: v7x
topology: tpu7x:2x2x1
jax: 0.10.0
libtpu: 0.0.40
codegen_flags: <defaults>
</compile_context>

<pallas_src>
import jax
import jax.numpy as jnp
from jax.experimental import pallas as pl
from jax.experimental.pallas import tpu as pltpu

_LANE = 128          # TPU lane width
_MAX_TILE = 2048     # per-tile VMEM footprint stays in the KB range even here


def _marginal_kernel_grad(t_ref, freq_ref, phase_ref, wt_ref, out_ref, grad_ref):
    # t_ref:    (1, TN)   time-stamp tile (time on lanes)
    # freq_ref: (K, 1)    basis angular frequencies (resident)
    # phase_ref:(K, 1)    basis phases (resident)
    # wt_ref:   (D, K)    W^T readout weights (resident)
    # out_ref:  (D, TN)   m(t) tile (lane-dense)
    # grad_ref: (D, TN)   dm/dt tile (lane-dense)
    t = t_ref[...]                         # (1, TN)
    freq = freq_ref[...]                   # (K, 1)   bound once, reused below
    phase = phase_ref[...]                 # (K, 1)
    arg = freq * t + phase                 # (K, TN)  VPU broadcast outer product
    phi = jnp.sin(arg)                     # (K, TN)  EUP
    dphi = freq * jnp.cos(arg)             # (K, TN)  EUP + VPU
    # Fuse both K-contractions into ONE MXU call; TN is a multiple of 128 so
    # the concat / slices are lane-tile aligned.
    stacked = jnp.concatenate([phi, dphi], axis=1)                 # (K, 2*TN)
    res = jnp.dot(wt_ref[...], stacked,
                  preferred_element_type=jnp.float32)              # (D, 2*TN)
    tn = out_ref.shape[1]
    out_ref[...] = res[:, :tn]
    grad_ref[...] = res[:, tn:]


def _marginal_kernel_nograd(t_ref, freq_ref, phase_ref, wt_ref, out_ref):
    # Specialized body: no cos, no grad matmul, no grad writeback.
    t = t_ref[...]                         # (1, TN)
    arg = freq_ref[...] * t + phase_ref[...]                       # (K, TN)
    out_ref[...] = jnp.dot(wt_ref[...], jnp.sin(arg),
                           preferred_element_type=jnp.float32)     # (D, TN)


def _auto_tile(n):
    """Lane-multiple time tile; prefer an even grid-step count (v7x megacore)."""
    n128 = -(-n // _LANE) * _LANE
    if n128 <= _MAX_TILE:
        if n128 >= 2 * _LANE and (n128 // 2) % _LANE == 0:
            return n128 // 2               # 2 even grid steps
        return n128                        # single tile
    return _MAX_TILE


def marginal_model_forward(t, freqs, phases, weights, *, return_grad=False,
                           tile_n=None):
    """Pallas forward pass of the MarginalModel.

    t:       (N,) float32 time stamps
    freqs:   (K,) float32
    phases:  (K,) float32
    weights: (K, D) float32
    returns  m(t) (N, D)   or   (m(t), dm/dt) if return_grad
    """
    N = int(t.shape[0])
    K, D = weights.shape

    if tile_n is None:
        tile_n = _auto_tile(N)
    assert tile_n % _LANE == 0, "tile_n must be a multiple of 128 (lane width)"
    n_pad = -(-N // tile_n) * tile_n
    grid = (n_pad // tile_n,)

    # Transposed, lane-dense host-side layout (pure layout plumbing).
    t_row = jnp.zeros((1, n_pad), jnp.float32).at[0, :N].set(
        t.astype(jnp.float32))                                   # (1, Npad)
    f_col = freqs.reshape(K, 1).astype(jnp.float32)              # (K, 1)
    p_col = phases.reshape(K, 1).astype(jnp.float32)             # (K, 1)
    w_t = weights.T.astype(jnp.float32)                          # (D, K)

    n_out = 2 if return_grad else 1
    cost = pl.CostEstimate(
        flops=2 * n_pad * K * D * n_out,
        transcendentals=n_pad * K * n_out,
        bytes_accessed=4 * (n_pad + 2 * K + K * D + n_pad * D * n_out),
    )

    in_specs = [
        pl.BlockSpec((1, tile_n), lambda i: (0, i)),   # t tile (time on lanes)
        pl.BlockSpec((K, 1), lambda i: (0, 0)),        # freqs (resident)
        pl.BlockSpec((K, 1), lambda i: (0, 0)),        # phases (resident)
        pl.BlockSpec((D, K), lambda i: (0, 0)),        # W^T (resident)
    ]
    out_block = pl.BlockSpec((D, tile_n), lambda i: (0, i))
    params = pltpu.CompilerParams(dimension_semantics=("parallel",))

    if return_grad:
        out_t, grad_t = pl.pallas_call(
            _marginal_kernel_grad,
            out_shape=(jax.ShapeDtypeStruct((D, n_pad), jnp.float32),
                       jax.ShapeDtypeStruct((D, n_pad), jnp.float32)),
            grid_spec=pltpu.PrefetchScalarGridSpec(
                num_scalar_prefetch=0, grid=grid,
                in_specs=in_specs, out_specs=[out_block, out_block]),
            compiler_params=params,
            cost_estimate=cost,
        )(t_row, f_col, p_col, w_t)
        return out_t[:, :N].T, grad_t[:, :N].T

    out_t = pl.pallas_call(
        _marginal_kernel_nograd,
        out_shape=jax.ShapeDtypeStruct((D, n_pad), jnp.float32),
        grid_spec=pltpu.PrefetchScalarGridSpec(
            num_scalar_prefetch=0, grid=grid,
            in_specs=in_specs, out_specs=out_block),
        compiler_params=params,
        cost_estimate=cost,
    )(t_row, f_col, p_col, w_t)
    return out_t[:, :N].T


def _reference_forward(t, freqs, phases, weights):
    arg = t[:, None] * freqs[None, :] + phases[None, :]
    phi = jnp.sin(arg)
    dphi = freqs[None, :] * jnp.cos(arg)
    return phi @ weights, dphi @ weights


if __name__ == "__main__":
    # Deterministic synthetic parameters. N is deliberately NOT a multiple of
    # 128 to exercise the padding / slicing path; K basis functions, D states.
    N, K, D = 200, 64, 8

    key = jax.random.PRNGKey(0)
    k_t, k_f, k_p, k_w = jax.random.split(key, 4)

    t = jnp.sort(jax.random.uniform(k_t, (N,), dtype=jnp.float32) * 10.0)
    freqs = jax.random.uniform(k_f, (K,), dtype=jnp.float32) * 2.0 + 0.1
    phases = jax.random.uniform(k_p, (K,), dtype=jnp.float32) * 2.0 * jnp.pi
    weights = jax.random.normal(k_w, (K, D), dtype=jnp.float32) / jnp.sqrt(
        jnp.float32(K))

    out, grad = marginal_model_forward(t, freqs, phases, weights,
                                       return_grad=True)
    out = jax.block_until_ready(out)
    grad = jax.block_until_ready(grad)

    out_only = jax.block_until_ready(
        marginal_model_forward(t, freqs, phases, weights, return_grad=False))

    ref_out, ref_grad = _reference_forward(t, freqs, phases, weights)
    assert out.shape == (N, D) and grad.shape == (N, D)
    assert out_only.shape == (N, D)
    assert jnp.allclose(out, ref_out, atol=1e-4, rtol=1e-4)
    assert jnp.allclose(grad, ref_grad, atol=1e-4, rtol=1e-4)
    assert jnp.allclose(out_only, ref_out, atol=1e-4, rtol=1e-4)

    print("KERNEL_OK")
</pallas_src>

<mosaic_0001>
module attributes {stable_mosaic.version = 11 : i64} {
  func.func @_marginal_kernel_grad(%arg0: i32, %arg1: memref<1x128xf32, #tpu.memory_space<vmem>>, %arg2: memref<64x1xf32, #tpu.memory_space<vmem>>, %arg3: memref<64x1xf32, #tpu.memory_space<vmem>>, %arg4: memref<8x64xf32, #tpu.memory_space<vmem>>, %arg5: memref<8x128xf32, #tpu.memory_space<vmem>>, %arg6: memref<8x128xf32, #tpu.memory_space<vmem>>) attributes {dimension_semantics = [#tpu.dimension_semantics<parallel>], iteration_bounds = array<i64: 2>, scalar_prefetch = 0 : i64, scratch_operands = 0 : i64, tpu.core_type = #tpu.core_type<tc>, window_params = [{transform_indices = @transform_0, window_bounds = array<i64: 1, 128>}, {pipeline_mode = #tpu.pipeline_mode<synchronous>, transform_indices = @transform_1, window_bounds = array<i64: 64, 1>}, {pipeline_mode = #tpu.pipeline_mode<synchronous>, transform_indices = @transform_2, window_bounds = array<i64: 64, 1>}, {pipeline_mode = #tpu.pipeline_mode<synchronous>, transform_indices = @transform_3, window_bounds = array<i64: 8, 64>}, {transform_indices = @transform_4, window_bounds = array<i64: 8, 128>}, {transform_indices = @transform_5, window_bounds = array<i64: 8, 128>}]} {
    %c0 = arith.constant 0 : index
    %c0_0 = arith.constant 0 : index
    %0 = vector.load %arg1[%c0, %c0_0] : memref<1x128xf32, #tpu.memory_space<vmem>>, vector<1x128xf32>
    %c0_1 = arith.constant 0 : index
    %c0_2 = arith.constant 0 : index
    %1 = vector.load %arg2[%c0_1, %c0_2] : memref<64x1xf32, #tpu.memory_space<vmem>>, vector<64x1xf32>
    %c0_3 = arith.constant 0 : index
    %c0_4 = arith.constant 0 : index
    %2 = vector.load %arg3[%c0_3, %c0_4] : memref<64x1xf32, #tpu.memory_space<vmem>>, vector<64x1xf32>
    %3 = vector.broadcast %1 : vector<64x1xf32> to vector<64x128xf32>
    %4 = vector.broadcast %0 : vector<1x128xf32> to vector<64x128xf32>
    %5 = arith.mulf %3, %4 : vector<64x128xf32>
    %6 = vector.broadcast %2 : vector<64x1xf32> to vector<64x128xf32>
    %7 = arith.addf %5, %6 : vector<64x128xf32>
    %8 = math.sin %7 : vector<64x128xf32>
    %9 = math.cos %7 : vector<64x128xf32>
    %10 = vector.broadcast %1 : vector<64x1xf32> to vector<64x128xf32>
    %11 = arith.mulf %10, %9 : vector<64x128xf32>
    %12 = tpu.concatenate %8, %11 in 1 : vector<64x128xf32>, vector<64x128xf32> -> vector<64x256xf32>
    %c0_5 = arith.constant 0 : index
    %c0_6 = arith.constant 0 : index
    %13 = vector.load %arg4[%c0_5, %c0_6] : memref<8x64xf32, #tpu.memory_space<vmem>>, vector<8x64xf32>
    %cst = arith.constant dense<0.000000e+00> : vector<8x256xf32>
    %14 = tpu.matmul %13, %12, %cst {dimension_numbers = #tpu.dot_dimension_numbers<[1], [0], [0], [1], [0, 0, 1, 1], [], []>} : vector<8x64xf32>, vector<64x256xf32>, vector<8x256xf32> -> vector<8x256xf32>
    %15 = vector.extract_strided_slice %14 {offsets = [0, 0], sizes = [8, 128], strides = [1, 1]} : vector<8x256xf32> to vector<8x128xf32>
    %c0_7 = arith.constant 0 : index
    %c0_8 = arith.constant 0 : index
    %16 = vector.load %arg5[%c0_7, %c0_8] : memref<8x128xf32, #tpu.memory_space<vmem>>, vector<8x128xf32>
    tpu.vector_store %arg5[%c0_7, %c0_8], %15 {strides = array<i32>} : memref<8x128xf32, #tpu.memory_space<vmem>>, vector<8x128xf32>,
    %17 = vector.extract_strided_slice %14 {offsets = [0, 128], sizes = [8, 128], strides = [1, 1]} : vector<8x256xf32> to vector<8x128xf32>
    %c0_9 = arith.constant 0 : index
    %c0_10 = arith.constant 0 : index
    %18 = vector.load %arg6[%c0_9, %c0_10] : memref<8x128xf32, #tpu.memory_space<vmem>>, vector<8x128xf32>
    tpu.vector_store %arg6[%c0_9, %c0_10], %17 {strides = array<i32>} : memref<8x128xf32, #tpu.memory_space<vmem>>, vector<8x128xf32>,
    return
  }
  func.func @transform_0(%arg0: i32) -> (i32, i32) {
    %c0_i32 = arith.constant 0 : i32
    %c0_i32_0 = arith.constant 0 : i32
    return %c0_i32, %arg0 : i32, i32
  }
  func.func @transform_1(%arg0: i32) -> (i32, i32) {
    %c0_i32 = arith.constant 0 : i32
    %c0_i32_0 = arith.constant 0 : i32
    %c0_i32_1 = arith.constant 0 : i32
    return %c0_i32, %c0_i32_0 : i32, i32
  }
  func.func @transform_2(%arg0: i32) -> (i32, i32) {
    %c0_i32 = arith.constant 0 : i32
    %c0_i32_0 = arith.constant 0 : i32
    %c0_i32_1 = arith.constant 0 : i32
    return %c0_i32, %c0_i32_0 : i32, i32
  }
  func.func @transform_3(%arg0: i32) -> (i32, i32) {
    %c0_i32 = arith.constant 0 : i32
    %c0_i32_0 = arith.constant 0 : i32
    %c0_i32_1 = arith.constant 0 : i32
    return %c0_i32, %c0_i32_0 : i32, i32
  }
  func.func @transform_4(%arg0: i32) -> (i32, i32) {
    %c0_i32 = arith.constant 0 : i32
    %c0_i32_0 = arith.constant 0 : i32
    return %c0_i32, %arg0 : i32, i32
  }
  func.func @transform_5(%arg0: i32) -> (i32, i32) {
    %c0_i32 = arith.constant 0 : i32
    %c0_i32_0 = arith.constant 0 : i32
    return %c0_i32, %arg0 : i32, i32
  }
}

</mosaic_0001>

<llo_original>
// kernel: tpu_custom_call.1
$region0: #{tpu_custom_call.1}
  #allocation0 [shape = 'u32[]', space=smem, size = 0x4, offset = 0x4, fixed_abs, tag = 'smem constant byte address 0x4 - core index']
  #allocation1 [shape = 'u32[144,128]{1,0:T(1,128)}', space=vmem, size = 0x12000, scoped, tag = 'internal scratch']
  %s0 = inlined_call_operand.vmem [shape: f32[1,256], index: 0, kind: input, shape index: {}]
  %s1 = inlined_call_operand.vmem [shape: f32[64,1], index: 1, kind: input, shape index: {}]
  %s2 = inlined_call_operand.vmem [shape: f32[64,1], index: 2, kind: input, shape index: {}]
  %s3 = inlined_call_operand.vmem [shape: f32[8,64], index: 3, kind: input, shape index: {}]
  %s4 = inlined_call_operand.hbm [shape: f32[8,256], index: 4, kind: output, shape index: {0}]
  %s5 = inlined_call_operand.hbm [shape: f32[8,256], index: 5, kind: output, shape index: {1}]
  %6 = xla_tuple %s4, %s5
  %s7 = sld [smem:[#allocation0]]
  $region57: #{tpu_custom_call.1} parent=0
    _
  %s9 = ssub.s32 1, %s7
  %s10 = scalar_select 0, %s9, %s7
  $region1: #{tpu_custom_call.1} parent=0
    #allocation2 [shape = 'u8[8192]{0}', space=vmem, size = 0x2000, scoped, tag = 'output window, operand 0']
    #allocation3 [shape = 's32[2]{0}', space=sflag, size = 0x8, scoped, tag = 'scoped memory for tpu_custom_call.1']
    #allocation4 [shape = 'u8[8192]{0}', space=vmem, size = 0x2000, scoped, tag = 'output window, operand 1']
    #allocation5 [shape = 's32[2]{0}', space=sflag, size = 0x8, scoped, tag = 'scoped memory for tpu_custom_call.1']
    %11 = vsyncpa [#allocation3], 0
    %s12 = scalar_lea.sflag [#allocation3], 1
    %13 = vsyncpa %s12, 0
    %14 = vsyncpa [#allocation5], 0
    %s15 = scalar_lea.sflag [#allocation5], 1
    %16 = vsyncpa %s15, 0
    loop: start=0, step=1, limit=4
    $region2: #{tpu_custom_call.1} parent=1 // loop_pre_header
      _
    $region3: #{tpu_custom_call.1} parent=1 // loop_header
      %s18 = sphi 0, %s22
      %p19 = scmp.ge.s32.totalorder %s18, 4
      %s28 = sphi 0, %s30
      %s31 = sphi 0, %s28
      %s32 = sphi 0, %s31
      %s48 = sphi 0, %s32
      %s52 = sphi 0, %s52
      %s54 = sphi 0, %s52
      %s55 = sphi 0, %s54
      %s69 = sphi 0, %s55
      %s73 = sphi 0, %s73
      %s75 = sphi 0, %s73
      %s76 = sphi 0, %s75
      %s90 = sphi 0, %s76
      %s94 = sphi 0, %s94
      %s96 = sphi 0, %s94
      %s97 = sphi 0, %s96
      %s111 = sphi 0, %s97
      %s117 = sphi 0, %s119
      %s120 = sphi 0, %s117
      %s121 = sphi 0, %s120
      %s137 = sphi 0, %s121
      %s143 = sphi 0, %s145
      %s146 = sphi 0, %s143
      %s147 = sphi 0, %s146
      %s163 = sphi 0, %s147
    $region4: #{tpu_custom_call.1} parent=1 // loop_header_branch
      %21 = sbr.rel (%p19) target = $region8
    $region5: #{tpu_custom_call.1} parent=1 // loop_body
      %s23 = ssub.s32 %s18, 1
      %s24 = ssub.s32 %s18, 2
      %s25 = sadd.s32 %s18, 1
      %s26 = ssub.s32 %s18, %s25
      %p27 = scmp.eq.s32.totalorder %s26, 0
      %s29 = sadd.s32 %s28, 1
      %s30 = scalar_select %p27, %s28, %s29
      %p33 = pneg %p27
      %p34 = scmp.eq.s32.totalorder %s18, 1
      %p35 = por %p33, %p34
      %p36 = scmp.ne.s32.totalorder %s28, %s31
      %p37 = scmp.eq.s32.totalorder %s18, 0
      %p38 = por %p36, %p37
      %p39 = scmp.ne.s32.totalorder %s28, %s31
      %p40 = scmp.eq.s32.totalorder %s23, 1
      %p41 = por %p39, %p40
      %p42 = scmp.ne.s32.totalorder %s31, %s32
      %p43 = scmp.eq.s32.totalorder %s23, 0
      %p44 = por %p42, %p43
      %p45 = scmp.ne.s32.totalorder %s31, %s32
      %p46 = scmp.eq.s32.totalorder %s24, 1
      %p47 = por %p45, %p46
      %p49 = scmp.ne.s32.totalorder %s32, %s48
      %p50 = scmp.eq.s32.totalorder %s24, 0
      %p51 = por %p49, %p50
      %s53 = sadd.s32 %s52, 1
      %p56 = scmp.eq.s32.totalorder %s18, 1
      %p57 = scmp.ne.s32.totalorder %s52, %s54
      %p58 = scmp.eq.s32.totalorder %s18, 0
      %p59 = por %p57, %p58
      %p60 = scmp.ne.s32.totalorder %s52, %s54
      %p61 = scmp.eq.s32.totalorder %s23, 1
      %p62 = por %p60, %p61
      %p63 = scmp.ne.s32.totalorder %s54, %s55
      %p64 = scmp.eq.s32.totalorder %s23, 0
      %p65 = por %p63, %p64
      %p66 = scmp.ne.s32.totalorder %s54, %s55
      %p67 = scmp.eq.s32.totalorder %s24, 1
      %p68 = por %p66, %p67
      %p70 = scmp.ne.s32.totalorder %s55, %s69
      %p71 = scmp.eq.s32.totalorder %s24, 0
      %p72 = por %p70, %p71
      %s74 = sadd.s32 %s73, 1
      %p77 = scmp.eq.s32.totalorder %s18, 1
      %p78 = scmp.ne.s32.totalorder %s73, %s75
      %p79 = scmp.eq.s32.totalorder %s18, 0
      %p80 = por %p78, %p79
      %p81 = scmp.ne.s32.totalorder %s73, %s75
      %p82 = scmp.eq.s32.totalorder %s23, 1
      %p83 = por %p81, %p82
      %p84 = scmp.ne.s32.totalorder %s75, %s76
      %p85 = scmp.eq.s32.totalorder %s23, 0
      %p86 = por %p84, %p85
      %p87 = scmp.ne.s32.totalorder %s75, %s76
      %p88 = scmp.eq.s32.totalorder %s24, 1
      %p89 = por %p87, %p88
      %p91 = scmp.ne.s32.totalorder %s76, %s90
      %p92 = scmp.eq.s32.totalorder %s24, 0
      %p93 = por %p91, %p92
      %s95 = sadd.s32 %s94, 1
      %p98 = scmp.eq.s32.totalorder %s18, 1
      %p99 = scmp.ne.s32.totalorder %s94, %s96
      %p100 = scmp.eq.s32.totalorder %s18, 0
      %p101 = por %p99, %p100
      %p102 = scmp.ne.s32.totalorder %s94, %s96
      %p103 = scmp.eq.s32.totalorder %s23, 1
      %p104 = por %p102, %p103
      %p105 = scmp.ne.s32.totalorder %s96, %s97
      %p106 = scmp.eq.s32.totalorder %s23, 0
      %p107 = por %p105, %p106
      %p108 = scmp.ne.s32.totalorder %s96, %s97
      %p109 = scmp.eq.s32.totalorder %s24, 1
      %p110 = por %p108, %p109
      %p112 = scmp.ne.s32.totalorder %s97, %s111
      %p113 = scmp.eq.s32.totalorder %s24, 0
      %p114 = por %p112, %p113
      %s115 = ssub.s32 %s18, %s25
      %p116 = scmp.eq.s32.totalorder %s115, 0
      %s118 = sadd.s32 %s117, 1
      %s119 = scalar_select %p116, %s117, %s118
      %p122 = pneg %p116
      %p123 = scmp.eq.s32.totalorder %s18, 1
      %p124 = por %p122, %p123
      %p125 = scmp.ne.s32.totalorder %s117, %s120
      %p126 = scmp.eq.s32.totalorder %s18, 0
      %p127 = por %p125, %p126
      %p128 = scmp.ne.s32.totalorder %s117, %s120
      %p129 = scmp.eq.s32.totalorder %s23, 1
      %p130 = por %p128, %p129
      %p131 = scmp.ne.s32.totalorder %s120, %s121
      %p132 = scmp.eq.s32.totalorder %s23, 0
      %p133 = por %p131, %p132
      %p134 = scmp.ne.s32.totalorder %s120, %s121
      %p135 = scmp.eq.s32.totalorder %s24, 1
      %p136 = por %p134, %p135
      %p138 = scmp.ne.s32.totalorder %s121, %s137
      %p139 = scmp.eq.s32.totalorder %s24, 0
      %p140 = por %p138, %p139
      %s141 = ssub.s32 %s18, %s25
      %p142 = scmp.eq.s32.totalorder %s141, 0
      %s144 = sadd.s32 %s143, 1
      %s145 = scalar_select %p142, %s143, %s144
      %p148 = pneg %p142
      %p149 = scmp.eq.s32.totalorder %s18, 1
      %p150 = por %p148, %p149
      %p151 = scmp.ne.s32.totalorder %s143, %s146
      %p152 = scmp.eq.s32.totalorder %s18, 0
      %p153 = por %p151, %p152
      %p154 = scmp.ne.s32.totalorder %s143, %s146
      %p155 = scmp.eq.s32.totalorder %s23, 1
      %p156 = por %p154, %p155
      %p157 = scmp.ne.s32.totalorder %s146, %s147
      %p158 = scmp.eq.s32.totalorder %s23, 0
      %p159 = por %p157, %p158
      %p160 = scmp.ne.s32.totalorder %s146, %s147
      %p161 = scmp.eq.s32.totalorder %s24, 1
      %p162 = por %p160, %p161
      %p164 = scmp.ne.s32.totalorder %s147, %s163
      %p165 = scmp.eq.s32.totalorder %s24, 0
      %p166 = por %p164, %p165
      %p167 = scmp.le.s32.totalorder 1, %s18
      %p168 = scmp.lt.s32.totalorder %s18, 3
      %p169 = pnand %p167, %p168
      %p170 = pneg %p169
      // Predicated region
      $region9: #{tpu_custom_call.1} parent=5 // pred_check
        _
      $region10: #{tpu_custom_call.1} parent=5 // pred_check_branch
        %172 = sbr.rel (%p169) target = $region12
      $region11: #{tpu_custom_call.1} parent=5 // pred_region
        %s173 = ssub.s32 %s18, 1
        // Predicated region
        $region13: #{tpu_custom_call.1} parent=11 // pred_check
          %p174 = pneg %p65
        $region14: #{tpu_custom_call.1} parent=11 // pred_check_branch
          %176 = sbr.rel (%p174) target = $region16
        $region15: #{tpu_custom_call.1} parent=11 // pred_region
          _
        $region16: #{tpu_custom_call.1} parent=11 // pred_fallthru
          _
        // Predicated region
        $region17: #{tpu_custom_call.1} parent=11 // pred_check
          %p177 = pneg %p86
        $region18: #{tpu_custom_call.1} parent=11 // pred_check_branch
          %179 = sbr.rel (%p177) target = $region20
        $region19: #{tpu_custom_call.1} parent=11 // pred_region
          _
        $region20: #{tpu_custom_call.1} parent=11 // pred_fallthru
          _
        // Predicated region
        $region21: #{tpu_custom_call.1} parent=11 // pred_check
          %p180 = pneg %p107
        $region22: #{tpu_custom_call.1} parent=11 // pred_check_branch
          %182 = sbr.rel (%p180) target = $region24
        $region23: #{tpu_custom_call.1} parent=11 // pred_region
          _
        $region24: #{tpu_custom_call.1} parent=11 // pred_fallthru
          _
      $region12: #{tpu_custom_call.1} parent=5 // pred_fallthru
        _
      %p183 = scmp.lt.s32.totalorder %s18, 2
      // Predicated region
      $region25: #{tpu_custom_call.1} parent=5 // pred_check
        %p184 = pneg %p183
      $region26: #{tpu_custom_call.1} parent=5 // pred_check_branch
        %186 = sbr.rel (%p184) target = $region28
      $region27: #{tpu_custom_call.1} parent=5 // pred_region
        // Predicated region
        $region29: #{tpu_custom_call.1} parent=27 // pred_check
          %p187 = pneg %p38
        $region30: #{tpu_custom_call.1} parent=27 // pred_check_branch
          %189 = sbr.rel (%p187) target = $region32
        $region31: #{tpu_custom_call.1} parent=27 // pred_region
          %p190 = scmp.lt.s32.totalorder %s18, 1
          %s191 = scalar_select %p190, %s18, 1
          %s192 = scalar_lea.vmem %s0, %s191
        $region32: #{tpu_custom_call.1} parent=27 // pred_fallthru
          _
      $region28: #{tpu_custom_call.1} parent=5 // pred_fallthru
        _
      %p193 = scmp.le.s32.totalorder 1, %s18
      %p194 = scmp.lt.s32.totalorder %s18, 3
      %p195 = pnand %p193, %p194
      %p196 = pneg %p195
      // Predicated region
      $region33: #{tpu_custom_call.1} parent=5 // pred_check
        _
      $region34: #{tpu_custom_call.1} parent=5 // pred_check_branch
        %198 = sbr.rel (%p195) target = $region36
      $region35: #{tpu_custom_call.1} parent=5 // pred_region
        %s199 = ssub.s32 %s18, 1
        %p200 = scmp.lt.s32.totalorder %s23, 1
        %s201 = scalar_select %p200, %s23, 1
        %s202 = scalar_lea.vmem %s0, %s201
        %p203 = pneg %p44
        %p204 = pneg %p41
        %p205 = pneg %p65
        %p206 = pneg %p62
        %p207 = pneg %p86
        %p208 = pneg %p83
        %p209 = pneg %p107
        %p210 = pneg %p104
        %p211 = pneg %p133
        %p212 = pneg %p130
        %s213 = sand.u32 %s120, 1
        %s214 = scalar_lea.sflag [#allocation3], %s213
        %s215 = sand.u32 %s120, 1
        %s216 = smul.addr %s215, 8
        %s217 = scalar_lea.vmem [#allocation2], %s216
        %p218 = pneg %p159
        %p219 = pneg %p156
        %s220 = sand.u32 %s146, 1
        %s221 = scalar_lea.sflag [#allocation5], %s220
        %s222 = sand.u32 %s146, 1
        %s223 = smul.addr %s222, 8
        %s224 = scalar_lea.vmem [#allocation4], %s223
        %p225 = scmp.lt.s32.totalorder %s23, 1
        %s226 = scalar_select %p225, %s23, 1
        %s227 = scalar_lea.vmem %s0, %s226
        %v228 = vld [vmem:[%s227] sm:$0x1]
        %v229 = vld [vmem:[%s1] sm:$0xff]
        %v230 = vld [vmem:[%s1 + $0x8] sm:$0xff]
        %v231 = vld [vmem:[%s1 + $0x10] sm:$0xff]
        %v232 = vld [vmem:[%s1 + $0x18] sm:$0xff]
        %v233 = vld [vmem:[%s1 + $0x20] sm:$0xff]
        %v234 = vld [vmem:[%s1 + $0x28] sm:$0xff]
        %v235 = vld [vmem:[%s1 + $0x30] sm:$0xff]
        %v236 = vld [vmem:[%s1 + $0x38] sm:$0xff]
        %v237 = vld [vmem:[%s2] sm:$0xff]
        %v238 = vld [vmem:[%s2 + $0x8] sm:$0xff]
        %v239 = vld [vmem:[%s2 + $0x10] sm:$0xff]
        %v240 = vld [vmem:[%s2 + $0x18] sm:$0xff]
        %v241 = vld [vmem:[%s2 + $0x20] sm:$0xff]
        %v242 = vld [vmem:[%s2 + $0x28] sm:$0xff]
        %v243 = vld [vmem:[%s2 + $0x30] sm:$0xff]
        %v244 = vld [vmem:[%s2 + $0x38] sm:$0xff]
        %246 = vset.pattern.permute.xlu0 0
        %247 = vperm.xlu0 %246, %v229
        %v248 = vpop.permute.xlu0 %247
        %251 = vset.pattern.permute.xlu0 0
        %252 = vperm.xlu0 %251, %v230
        %v253 = vpop.permute.xlu0 %252
        %256 = vset.pattern.permute.xlu0 0
        %257 = vperm.xlu0 %256, %v231
        %v258 = vpop.permute.xlu0 %257
        %261 = vset.pattern.permute.xlu0 0
        %262 = vperm.xlu0 %261, %v232
        %v263 = vpop.permute.xlu0 %262
        %266 = vset.pattern.permute.xlu0 0
        %267 = vperm.xlu0 %266, %v233
        %v268 = vpop.permute.xlu0 %267
        %271 = vset.pattern.permute.xlu0 0
        %272 = vperm.xlu0 %271, %v234
        %v273 = vpop.permute.xlu0 %272
        %276 = vset.pattern.permute.xlu0 0
        %277 = vperm.xlu0 %276, %v235
        %v278 = vpop.permute.xlu0 %277
        %281 = vset.pattern.permute.xlu0 0
        %282 = vperm.xlu0 %281, %v236
        %v283 = vpop.permute.xlu0 %282
        %v286 = vlaneseq
        %v287 = vshrl.u32 %v286, 7
        %v288 = vsub.s32 0, %v287
        %v289 = vrot.slane %v228, %v288
        %v291 = vmul.f32 %v248, %v289
        %v292 = vmul.f32 %v253, %v289
        %v293 = vmul.f32 %v258, %v289
        %v294 = vmul.f32 %v263, %v289
        %v295 = vmul.f32 %v268, %v289
        %v296 = vmul.f32 %v273, %v289
        %v297 = vmul.f32 %v278, %v289
        %v298 = vmul.f32 %v283, %v289
        %300 = vset.pattern.permute.xlu0 0
        %301 = vperm.xlu0 %300, %v237
        %v302 = vpop.permute.xlu0 %301
        %305 = vset.pattern.permute.xlu0 0
        %306 = vperm.xlu0 %305, %v238
        %v307 = vpop.permute.xlu0 %306
        %310 = vset.pattern.permute.xlu0 0
        %311 = vperm.xlu0 %310, %v239
        %v312 = vpop.permute.xlu0 %311
        %315 = vset.pattern.permute.xlu0 0
        %316 = vperm.xlu0 %315, %v240
        %v317 = vpop.permute.xlu0 %316
        %320 = vset.pattern.permute.xlu0 0
        %321 = vperm.xlu0 %320, %v241
        %v322 = vpop.permute.xlu0 %321
        %325 = vset.pattern.permute.xlu0 0
        %326 = vperm.xlu0 %325, %v242
        %v327 = vpop.permute.xlu0 %326
        %330 = vset.pattern.permute.xlu0 0
        %331 = vperm.xlu0 %330, %v243
        %v332 = vpop.permute.xlu0 %331
        %335 = vset.pattern.permute.xlu0 0
        %336 = vperm.xlu0 %335, %v244
        %v337 = vpop.permute.xlu0 %336
        %v339 = vadd.f32 %v291, %v302
        %v340 = vadd.f32 %v292, %v307
        %v341 = vadd.f32 %v293, %v312
        %v342 = vadd.f32 %v294, %v317
        %v343 = vadd.f32 %v295, %v322
        %v344 = vadd.f32 %v296, %v327
        %v345 = vadd.f32 %v297, %v332
        %v346 = vadd.f32 %v298, %v337
        %v347 = vand.u32 2147483647, %v339
        %vm348 = vcmp.le.f32.partialorder %v347, 0.7853982
        %vm349 = vcmp.lt.s32.totalorder %v339, 0
        %v350 = vand.u32 %v339, 2139095040
        %v351 = vshrl.u32 %v350, 23
        %v352 = vsub.s32 %v351, 127
        %v353 = vand.u32 2147483647, %v339
        %v354 = vand.u32 %v353, 8388607
        %v355 = vor.u32 %v354, 8388608
        %v356 = vsub.s32 0, %v355
        %v357 = vadd.s32 %v352, 1
        %vm358 = vcmp.gt.s32.totalorder %v357, 0
        %v359 = vsel %vm358, %v357, 0
        %v360 = vshrl.u32 %v359, 5
        %v361 = vand.u32 %v359, 31
        %v362 = vsub.s32 32, %v361
        %v363 = vshrl.u32 683565275, %v362
        %v364 = vshll.u32 683565275, %v361
        %v365 = vshrl.u32 2475754826, %v362
        %v366 = vor.u32 %v364, %v365
        %v367 = vshll.u32 2475754826, %v361
        %v368 = vshrl.u32 2131351028, %v362
        %v369 = vor.u32 %v367, %v368
        %v370 = vshll.u32 2131351028, %v361
        %v371 = vshrl.u32 2102212464, %v362
        %v372 = vor.u32 %v370, %v371
        %v373 = vshll.u32 2102212464, %v361
        %v374 = vshrl.u32 920167782, %v362
        %v375 = vor.u32 %v373, %v374
        %v376 = vshll.u32 920167782, %v361
        %v377 = vshrl.u32 1326507024, %v362
        %v378 = vor.u32 %v376, %v377
        %vm379 = vcmp.lt.s32.totalorder %v360, 1
        %vm380 = vcmp.lt.s32.totalorder %v360, 2
        %vm381 = vcmp.lt.s32.totalorder %v360, 3
        %vm382 = vcmp.lt.s32.totalorder %v360, 4
        %v383 = vsel %vm379, %v363, %v366
        %v384 = vsel %vm382, %v372, 2102212464
        %v385 = vsel %vm381, %v369, %v384
        %v386 = vsel %vm380, %v383, %v385
        %v387 = vsel %vm379, %v366, %v369
        %v388 = vsel %vm382, %v375, 920167782
        %v389 = vsel %vm381, %v372, %v388
        %v390 = vsel %vm380, %v387, %v389
        %v391 = vsel %vm379, %v369, %v372
        %v392 = vsel %vm382, %v378, 1326507024
        %v393 = vsel %vm381, %v375, %v392
        %v394 = vsel %vm380, %v391, %v393
        %v395 = vshll.u32 %v355, 8
        %v396 = vmul.u32.u64.compose %v395, %v394
        %v397 = vextract.low.u32 %v396
        %v398 = vextract.high.u32 %v396
        %v399 = vmul.u32.u64.compose %v395, %v390
        %v400 = vextract.low.u32 %v399
        %v401 = vextract.high.u32 %v399
        %v402 = vmul.u32 %v395, %v386
        %v403 = vadd.s32 %v398, %v400
        %vm404 = vc.u32 %v398, %v400
        %v405 = vadd.s32 %v401, 1
        %v406 = vsel %vm404, %v405, %v401
        %v407 = vadd.s32 %v402, %v406
        %v408 = vadd.s32 %v407, 536870912
        %v409 = vshrl.u32 %v408, 30
        %v410 = vshll.u32 %v409, 30
        %v411 = vsub.s32 %v407, %v410
        %vm412 = vcmp.lt.s32.totalorder %v411, 0
        %v413 = vsub.s32 0, %v411
        %v414 = vsel %vm412, %v413, %v411
        %v415 = vclz %v414
        %v416 = vsub.s32 %v415, 2
        %vm417 = vcmp.gt.s32.totalorder 0, %v416
        %v418 = vsel %vm417, 0, %v416
        %v419 = vsub.s32 32, %v418
        %v420 = vshll.u32 %v411, %v418
        %v421 = vshrl.u32 %v403, %v419
        %v422 = vor.u32 %v420, %v421
        %v423 = vsub.s32 4294967266, %v418
        %v424 = vadd.s32 %v423, 127
        %v425 = vshll.u32 %v424, 23
        %v426 = vor.u32 4788187, %v425
        %v427 = vand.u32 2147483647, %v426
        %v429 = vcvt.s32.f32 %v422
        %v430 = vmul.f32 %v429, %v427
        %v431 = vxor.u32 %v430, 2147483648
        %v432 = vsel %vm349, %v431, %v430
        %v433 = vsub.s32 4, %v409
        %v434 = vsel %vm349, %v433, %v409
        %v435 = vsel %vm348, %v339, %v432
        %v436 = vsel %vm348, 0, %v434
        %v437 = vcosq.f32.pop %v435
        %v438 = vsinq.f32.pop %v435
        %vm439 = vweird.f32 %v339
        %v440 = vadd.s32 %v436, 3
        %v441 = vand.u32 %v440, 3
        %vm442 = vcmp.lt.s32.totalorder %v441, 2
        %vm443 = vcmp.eq.s32.totalorder %v441, 0
        %v444 = vxor.u32 %v438, 2147483648
        %v445 = vsel %vm443, %v437, %v444
        %vm446 = vcmp.eq.s32.totalorder %v441, 2
        %v447 = vxor.u32 %v437, 2147483648
        %v448 = vsel %vm446, %v447, %v438
        %v449 = vsel %vm442, %v445, %v448
        %v450 = vsel %vm439, nan, %v449
        %v451 = vand.u32 2147483647, %v340
        %vm452 = vcmp.le.f32.partialorder %v451, 0.7853982
        %vm453 = vcmp.lt.s32.totalorder %v340, 0
        %v454 = vand.u32 %v340, 2139095040
        %v455 = vshrl.u32 %v454, 23
        %v456 = vsub.s32 %v455, 127
        %v457 = vand.u32 2147483647, %v340
        %v458 = vand.u32 %v457, 8388607
        %v459 = vor.u32 %v458, 8388608
        %v460 = vsub.s32 0, %v459
        %v461 = vadd.s32 %v456, 1
        %vm462 = vcmp.gt.s32.totalorder %v461, 0
        %v463 = vsel %vm462, %v461, 0
        %v464 = vshrl.u32 %v463, 5
        %v465 = vand.u32 %v463, 31
        %v466 = vsub.s32 32, %v465
        %v467 = vshrl.u32 683565275, %v466
        %v468 = vshll.u32 683565275, %v465
        %v469 = vshrl.u32 2475754826, %v466
        %v470 = vor.u32 %v468, %v469
        %v471 = vshll.u32 2475754826, %v465
        %v472 = vshrl.u32 2131351028, %v466
        %v473 = vor.u32 %v471, %v472
        %v474 = vshll.u32 2131351028, %v465
        %v475 = vshrl.u32 2102212464, %v466
        %v476 = vor.u32 %v474, %v475
        %v477 = vshll.u32 2102212464, %v465
        %v478 = vshrl.u32 920167782, %v466
        %v479 = vor.u32 %v477, %v478
        %v480 = vshll.u32 920167782, %v465
        %v481 = vshrl.u32 1326507024, %v466
        %v482 = vor.u32 %v480, %v481
        %vm483 = vcmp.lt.s32.totalorder %v464, 1
        %vm484 = vcmp.lt.s32.totalorder %v464, 2
        %vm485 = vcmp.lt.s32.totalorder %v464, 3
        %vm486 = vcmp.lt.s32.totalorder %v464, 4
        %v487 = vsel %vm483, %v467, %v470
        %v488 = vsel %vm486, %v476, 2102212464
        %v489 = vsel %vm485, %v473, %v488
        %v490 = vsel %vm484, %v487, %v489
        %v491 = vsel %vm483, %v470, %v473
        %v492 = vsel %vm486, %v479, 920167782
        %v493 = vsel %vm485, %v476, %v492
        %v494 = vsel %vm484, %v491, %v493
        %v495 = vsel %vm483, %v473, %v476
        %v496 = vsel %vm486, %v482, 1326507024
        %v497 = vsel %vm485, %v479, %v496
        %v498 = vsel %vm484, %v495, %v497
        %v499 = vshll.u32 %v459, 8
        %v500 = vmul.u32.u64.compose %v499, %v498
        %v501 = vextract.low.u32 %v500
        %v502 = vextract.high.u32 %v500
        %v503 = vmul.u32.u64.compose %v499, %v494
        %v504 = vextract.low.u32 %v503
        %v505 = vextract.high.u32 %v503
        %v506 = vmul.u32 %v499, %v490
        %v507 = vadd.s32 %v502, %v504
        %vm508 = vc.u32 %v502, %v504
        %v509 = vadd.s32 %v505, 1
        %v510 = vsel %vm508, %v509, %v505
        %v511 = vadd.s32 %v506, %v510
        %v512 = vadd.s32 %v511, 536870912
        %v513 = vshrl.u32 %v512, 30
        %v514 = vshll.u32 %v513, 30
        %v515 = vsub.s32 %v511, %v514
        %vm516 = vcmp.lt.s32.totalorder %v515, 0
        %v517 = vsub.s32 0, %v515
        %v518 = vsel %vm516, %v517, %v515
        %v519 = vclz %v518
        %v520 = vsub.s32 %v519, 2
        %vm521 = vcmp.gt.s32.totalorder 0, %v520
        %v522 = vsel %vm521, 0, %v520
        %v523 = vsub.s32 32, %v522
        %v524 = vshll.u32 %v515, %v522
        %v525 = vshrl.u32 %v507, %v523
        %v526 = vor.u32 %v524, %v525
        %v527 = vsub.s32 4294967266, %v522
        %v528 = vadd.s32 %v527, 127
        %v529 = vshll.u32 %v528, 23
        %v530 = vor.u32 4788187, %v529
        %v531 = vand.u32 2147483647, %v530
        %v533 = vcvt.s32.f32 %v526
        %v534 = vmul.f32 %v533, %v531
        %v535 = vxor.u32 %v534, 2147483648
        %v536 = vsel %vm453, %v535, %v534
        %v537 = vsub.s32 4, %v513
        %v538 = vsel %vm453, %v537, %v513
        %v539 = vsel %vm452, %v340, %v536
        %v540 = vsel %vm452, 0, %v538
        %v541 = vcosq.f32.pop %v539
        %v542 = vsinq.f32.pop %v539
        %vm543 = vweird.f32 %v340
        %v544 = vadd.s32 %v540, 3
        %v545 = vand.u32 %v544, 3
        %vm546 = vcmp.lt.s32.totalorder %v545, 2
        %vm547 = vcmp.eq.s32.totalorder %v545, 0
        %v548 = vxor.u32 %v542, 2147483648
        %v549 = vsel %vm547, %v541, %v548
        %vm550 = vcmp.eq.s32.totalorder %v545, 2
        %v551 = vxor.u32 %v541, 2147483648
        %v552 = vsel %vm550, %v551, %v542
        %v553 = vsel %vm546, %v549, %v552
        %v554 = vsel %vm543, nan, %v553
        %v555 = vand.u32 2147483647, %v341
        %vm556 = vcmp.le.f32.partialorder %v555, 0.7853982
        %vm557 = vcmp.lt.s32.totalorder %v341, 0
        %v558 = vand.u32 %v341, 2139095040
        %v559 = vshrl.u32 %v558, 23
        %v560 = vsub.s32 %v559, 127
        %v561 = vand.u32 2147483647, %v341
        %v562 = vand.u32 %v561, 8388607
        %v563 = vor.u32 %v562, 8388608
        %v564 = vsub.s32 0, %v563
        %v565 = vadd.s32 %v560, 1
        %vm566 = vcmp.gt.s32.totalorder %v565, 0
        %v567 = vsel %vm566, %v565, 0
        %v568 = vshrl.u32 %v567, 5
        %v569 = vand.u32 %v567, 31
        %v570 = vsub.s32 32, %v569
        %v571 = vshrl.u32 683565275, %v570
        %v572 = vshll.u32 683565275, %v569
        %v573 = vshrl.u32 2475754826, %v570
        %v574 = vor.u32 %v572, %v573
        %v575 = vshll.u32 2475754826, %v569
        %v576 = vshrl.u32 2131351028, %v570
        %v577 = vor.u32 %v575, %v576
        %v578 = vshll.u32 2131351028, %v569
        %v579 = vshrl.u32 2102212464, %v570
        %v580 = vor.u32 %v578, %v579
        %v581 = vshll.u32 2102212464, %v569
        %v582 = vshrl.u32 920167782, %v570
        %v583 = vor.u32 %v581, %v582
        %v584 = vshll.u32 920167782, %v569
        %v585 = vshrl.u32 1326507024, %v570
        %v586 = vor.u32 %v584, %v585
        %vm587 = vcmp.lt.s32.totalorder %v568, 1
        %vm588 = vcmp.lt.s32.totalorder %v568, 2
        %vm589 = vcmp.lt.s32.totalorder %v568, 3
        %vm590 = vcmp.lt.s32.totalorder %v568, 4
        %v591 = vsel %vm587, %v571, %v574
        %v592 = vsel %vm590, %v580, 2102212464
        %v593 = vsel %vm589, %v577, %v592
        %v594 = vsel %vm588, %v591, %v593
        %v595 = vsel %vm587, %v574, %v577
        %v596 = vsel %vm590, %v583, 920167782
        %v597 = vsel %vm589, %v580, %v596
        %v598 = vsel %vm588, %v595, %v597
        %v599 = vsel %vm587, %v577, %v580
        %v600 = vsel %vm590, %v586, 1326507024
        %v601 = vsel %vm589, %v583, %v600
        %v602 = vsel %vm588, %v599, %v601
        %v603 = vshll.u32 %v563, 8
        %v604 = vmul.u32.u64.compose %v603, %v602
        %v605 = vextract.low.u32 %v604
        %v606 = vextract.high.u32 %v604
        %v607 = vmul.u32.u64.compose %v603, %v598
        %v608 = vextract.low.u32 %v607
        %v609 = vextract.high.u32 %v607
        %v610 = vmul.u32 %v603, %v594
        %v611 = vadd.s32 %v606, %v608
        %vm612 = vc.u32 %v606, %v608
        %v613 = vadd.s32 %v609, 1
        %v614 = vsel %vm612, %v613, %v609
        %v615 = vadd.s32 %v610, %v614
        %v616 = vadd.s32 %v615, 536870912
        %v617 = vshrl.u32 %v616, 30
        %v618 = vshll.u32 %v617, 30
        %v619 = vsub.s32 %v615, %v618
        %vm620 = vcmp.lt.s32.totalorder %v619, 0
        %v621 = vsub.s32 0, %v619
        %v622 = vsel %vm620, %v621, %v619
        %v623 = vclz %v622
        %v624 = vsub.s32 %v623, 2
        %vm625 = vcmp.gt.s32.totalorder 0, %v624
        %v626 = vsel %vm625, 0, %v624
        %v627 = vsub.s32 32, %v626
        %v628 = vshll.u32 %v619, %v626
        %v629 = vshrl.u32 %v611, %v627
        %v630 = vor.u32 %v628, %v629
        %v631 = vsub.s32 4294967266, %v626
        %v632 = vadd.s32 %v631, 127
        %v633 = vshll.u32 %v632, 23
        %v634 = vor.u32 4788187, %v633
        %v635 = vand.u32 2147483647, %v634
        %v637 = vcvt.s32.f32 %v630
        %v638 = vmul.f32 %v637, %v635
        %v639 = vxor.u32 %v638, 2147483648
        %v640 = vsel %vm557, %v639, %v638
        %v641 = vsub.s32 4, %v617
        %v642 = vsel %vm557, %v641, %v617
        %v643 = vsel %vm556, %v341, %v640
        %v644 = vsel %vm556, 0, %v642
        %v645 = vcosq.f32.pop %v643
        %v646 = vsinq.f32.pop %v643
        %vm647 = vweird.f32 %v341
        %v648 = vadd.s32 %v644, 3
        %v649 = vand.u32 %v648, 3
        %vm650 = vcmp.lt.s32.totalorder %v649, 2
        %vm651 = vcmp.eq.s32.totalorder %v649, 0
        %v652 = vxor.u32 %v646, 2147483648
        %v653 = vsel %vm651, %v645, %v652
        %vm654 = vcmp.eq.s32.totalorder %v649, 2
        %v655 = vxor.u32 %v645, 2147483648
        %v656 = vsel %vm654, %v655, %v646
        %v657 = vsel %vm650, %v653, %v656
        %v658 = vsel %vm647, nan, %v657
        %v659 = vand.u32 2147483647, %v342
        %vm660 = vcmp.le.f32.partialorder %v659, 0.7853982
        %vm661 = vcmp.lt.s32.totalorder %v342, 0
        %v662 = vand.u32 %v342, 2139095040
        %v663 = vshrl.u32 %v662, 23
        %v664 = vsub.s32 %v663, 127
        %v665 = vand.u32 2147483647, %v342
        %v666 = vand.u32 %v665, 8388607
        %v667 = vor.u32 %v666, 8388608
        %v668 = vsub.s32 0, %v667
        %v669 = vadd.s32 %v664, 1
        %vm670 = vcmp.gt.s32.totalorder %v669, 0
        %v671 = vsel %vm670, %v669, 0
        %v672 = vshrl.u32 %v671, 5
        %v673 = vand.u32 %v671, 31
        %v674 = vsub.s32 32, %v673
        %v675 = vshrl.u32 683565275, %v674
        %v676 = vshll.u32 683565275, %v673
        %v677 = vshrl.u32 2475754826, %v674
        %v678 = vor.u32 %v676, %v677
        %v679 = vshll.u32 2475754826, %v673
        %v680 = vshrl.u32 2131351028, %v674
        %v681 = vor.u32 %v679, %v680
        %v682 = vshll.u32 2131351028, %v673
        %v683 = vshrl.u32 2102212464, %v674
        %v684 = vor.u32 %v682, %v683
        %v685 = vshll.u32 2102212464, %v673
        %v686 = vshrl.u32 920167782, %v674
        %v687 = vor.u32 %v685, %v686
        %v688 = vshll.u32 920167782, %v673
        %v689 = vshrl.u32 1326507024, %v674
        %v690 = vor.u32 %v688, %v689
        %vm691 = vcmp.lt.s32.totalorder %v672, 1
        %vm692 = vcmp.lt.s32.totalorder %v672, 2
        %vm693 = vcmp.lt.s32.totalorder %v672, 3
        %vm694 = vcmp.lt.s32.totalorder %v672, 4
        %v695 = vsel %vm691, %v675, %v678
        %v696 = vsel %vm694, %v684, 2102212464
        %v697 = vsel %vm693, %v681, %v696
        %v698 = vsel %vm692, %v695, %v697
        %v699 = vsel %vm691, %v678, %v681
        %v700 = vsel %vm694, %v687, 920167782
        %v701 = vsel %vm693, %v684, %v700
        %v702 = vsel %vm692, %v699, %v701
        %v703 = vsel %vm691, %v681, %v684
        %v704 = vsel %vm694, %v690, 1326507024
        %v705 = vsel %vm693, %v687, %v704
        %v706 = vsel %vm692, %v703, %v705
        %v707 = vshll.u32 %v667, 8
        %v708 = vmul.u32.u64.compose %v707, %v706
        %v709 = vextract.low.u32 %v708
        %v710 = vextract.high.u32 %v708
        %v711 = vmul.u32.u64.compose %v707, %v702
        %v712 = vextract.low.u32 %v711
        %v713 = vextract.high.u32 %v711
        %v714 = vmul.u32 %v707, %v698
        %v715 = vadd.s32 %v710, %v712
        %vm716 = vc.u32 %v710, %v712
        %v717 = vadd.s32 %v713, 1
        %v718 = vsel %vm716, %v717, %v713
        %v719 = vadd.s32 %v714, %v718
        %v720 = vadd.s32 %v719, 536870912
        %v721 = vshrl.u32 %v720, 30
        %v722 = vshll.u32 %v721, 30
        %v723 = vsub.s32 %v719, %v722
        %vm724 = vcmp.lt.s32.totalorder %v723, 0
        %v725 = vsub.s32 0, %v723
        %v726 = vsel %vm724, %v725, %v723
        %v727 = vclz %v726
        %v728 = vsub.s32 %v727, 2
        %vm729 = vcmp.gt.s32.totalorder 0, %v728
        %v730 = vsel %vm729, 0, %v728
        %v731 = vsub.s32 32, %v730
        %v732 = vshll.u32 %v723, %v730
        %v733 = vshrl.u32 %v715, %v731
        %v734 = vor.u32 %v732, %v733
        %v735 = vsub.s32 4294967266, %v730
        %v736 = vadd.s32 %v735, 127
        %v737 = vshll.u32 %v736, 23
        %v738 = vor.u32 4788187, %v737
        %v739 = vand.u32 2147483647, %v738
        %v741 = vcvt.s32.f32 %v734
        %v742 = vmul.f32 %v741, %v739
        %v743 = vxor.u32 %v742, 2147483648
        %v744 = vsel %vm661, %v743, %v742
        %v745 = vsub.s32 4, %v721
        %v746 = vsel %vm661, %v745, %v721
        %v747 = vsel %vm660, %v342, %v744
        %v748 = vsel %vm660, 0, %v746
        %v749 = vcosq.f32.pop %v747
        %v750 = vsinq.f32.pop %v747
        %vm751 = vweird.f32 %v342
        %v752 = vadd.s32 %v748, 3
        %v753 = vand.u32 %v752, 3
        %vm754 = vcmp.lt.s32.totalorder %v753, 2
        %vm755 = vcmp.eq.s32.totalorder %v753, 0
        %v756 = vxor.u32 %v750, 2147483648
        %v757 = vsel %vm755, %v749, %v756
        %vm758 = vcmp.eq.s32.totalorder %v753, 2
        %v759 = vxor.u32 %v749, 2147483648
        %v760 = vsel %vm758, %v759, %v750
        %v761 = vsel %vm754, %v757, %v760
        %v762 = vsel %vm751, nan, %v761
        %v763 = vand.u32 2147483647, %v343
        %vm764 = vcmp.le.f32.partialorder %v763, 0.7853982
        %vm765 = vcmp.lt.s32.totalorder %v343, 0
        %v766 = vand.u32 %v343, 2139095040
        %v767 = vshrl.u32 %v766, 23
        %v768 = vsub.s32 %v767, 127
        %v769 = vand.u32 2147483647, %v343
        %v770 = vand.u32 %v769, 8388607
        %v771 = vor.u32 %v770, 8388608
        %v772 = vsub.s32 0, %v771
        %v773 = vadd.s32 %v768, 1
        %vm774 = vcmp.gt.s32.totalorder %v773, 0
        %v775 = vsel %vm774, %v773, 0
        %v776 = vshrl.u32 %v775, 5
        %v777 = vand.u32 %v775, 31
        %v778 = vsub.s32 32, %v777
        %v779 = vshrl.u32 683565275, %v778
        %v780 = vshll.u32 683565275, %v777
        %v781 = vshrl.u32 2475754826, %v778
        %v782 = vor.u32 %v780, %v781
        %v783 = vshll.u32 2475754826, %v777
        %v784 = vshrl.u32 2131351028, %v778
        %v785 = vor.u32 %v783, %v784
        %v786 = vshll.u32 2131351028, %v777
        %v787 = vshrl.u32 2102212464, %v778
        %v788 = vor.u32 %v786, %v787
        %v789 = vshll.u32 2102212464, %v777
        %v790 = vshrl.u32 920167782, %v778
        %v791 = vor.u32 %v789, %v790
        %v792 = vshll.u32 920167782, %v777
        %v793 = vshrl.u32 1326507024, %v778
        %v794 = vor.u32 %v792, %v793
        %vm795 = vcmp.lt.s32.totalorder %v776, 1
        %vm796 = vcmp.lt.s32.totalorder %v776, 2
        %vm797 = vcmp.lt.s32.totalorder %v776, 3
        %vm798 = vcmp.lt.s32.totalorder %v776, 4
        %v799 = vsel %vm795, %v779, %v782
        %v800 = vsel %vm798, %v788, 2102212464
        %v801 = vsel %vm797, %v785, %v800
        %v802 = vsel %vm796, %v799, %v801
        %v803 = vsel %vm795, %v782, %v785
        %v804 = vsel %vm798, %v791, 920167782
        %v805 = vsel %vm797, %v788, %v804
        %v806 = vsel %vm796, %v803, %v805
        %v807 = vsel %vm795, %v785, %v788
        %v808 = vsel %vm798, %v794, 1326507024
        %v809 = vsel %vm797, %v791, %v808
        %v810 = vsel %vm796, %v807, %v809
        %v811 = vshll.u32 %v771, 8
        %v812 = vmul.u32.u64.compose %v811, %v810
        %v813 = vextract.low.u32 %v812
        %v814 = vextract.high.u32 %v812
        %v815 = vmul.u32.u64.compose %v811, %v806
        %v816 = vextract.low.u32 %v815
        %v817 = vextract.high.u32 %v815
        %v818 = vmul.u32 %v811, %v802
        %v819 = vadd.s32 %v814, %v816
        %vm820 = vc.u32 %v814, %v816
        %v821 = vadd.s32 %v817, 1
        %v822 = vsel %vm820, %v821, %v817
        %v823 = vadd.s32 %v818, %v822
        %v824 = vadd.s32 %v823, 536870912
        %v825 = vshrl.u32 %v824, 30
        %v826 = vshll.u32 %v825, 30
        %v827 = vsub.s32 %v823, %v826
        %vm828 = vcmp.lt.s32.totalorder %v827, 0
        %v829 = vsub.s32 0, %v827
        %v830 = vsel %vm828, %v829, %v827
        %v831 = vclz %v830
        %v832 = vsub.s32 %v831, 2
        %vm833 = vcmp.gt.s32.totalorder 0, %v832
        %v834 = vsel %vm833, 0, %v832
        %v835 = vsub.s32 32, %v834
        %v836 = vshll.u32 %v827, %v834
        %v837 = vshrl.u32 %v819, %v835
        %v838 = vor.u32 %v836, %v837
        %v839 = vsub.s32 4294967266, %v834
        %v840 = vadd.s32 %v839, 127
        %v841 = vshll.u32 %v840, 23
        %v842 = vor.u32 4788187, %v841
        %v843 = vand.u32 2147483647, %v842
        %v845 = vcvt.s32.f32 %v838
        %v846 = vmul.f32 %v845, %v843
        %v847 = vxor.u32 %v846, 2147483648
        %v848 = vsel %vm765, %v847, %v846
        %v849 = vsub.s32 4, %v825
        %v850 = vsel %vm765, %v849, %v825
        %v851 = vsel %vm764, %v343, %v848
        %v852 = vsel %vm764, 0, %v850
        %v853 = vcosq.f32.pop %v851
        %v854 = vsinq.f32.pop %v851
        %vm855 = vweird.f32 %v343
        %v856 = vadd.s32 %v852, 3
        %v857 = vand.u32 %v856, 3
        %vm858 = vcmp.lt.s32.totalorder %v857, 2
        %vm859 = vcmp.eq.s32.totalorder %v857, 0
        %v860 = vxor.u32 %v854, 2147483648
        %v861 = vsel %vm859, %v853, %v860
        %vm862 = vcmp.eq.s32.totalorder %v857, 2
        %v863 = vxor.u32 %v853, 2147483648
        %v864 = vsel %vm862, %v863, %v854
        %v865 = vsel %vm858, %v861, %v864
        %v866 = vsel %vm855, nan, %v865
        %v867 = vand.u32 2147483647, %v344
        %vm868 = vcmp.le.f32.partialorder %v867, 0.7853982
        %vm869 = vcmp.lt.s32.totalorder %v344, 0
        %v870 = vand.u32 %v344, 2139095040
        %v871 = vshrl.u32 %v870, 23
        %v872 = vsub.s32 %v871, 127
        %v873 = vand.u32 2147483647, %v344
        %v874 = vand.u32 %v873, 8388607
        %v875 = vor.u32 %v874, 8388608
        %v876 = vsub.s32 0, %v875
        %v877 = vadd.s32 %v872, 1
        %vm878 = vcmp.gt.s32.totalorder %v877, 0
        %v879 = vsel %vm878, %v877, 0
        %v880 = vshrl.u32 %v879, 5
        %v881 = vand.u32 %v879, 31
        %v882 = vsub.s32 32, %v881
        %v883 = vshrl.u32 683565275, %v882
        %v884 = vshll.u32 683565275, %v881
        %v885 = vshrl.u32 2475754826, %v882
        %v886 = vor.u32 %v884, %v885
        %v887 = vshll.u32 2475754826, %v881
        %v888 = vshrl.u32 2131351028, %v882
        %v889 = vor.u32 %v887, %v888
        %v890 = vshll.u32 2131351028, %v881
        %v891 = vshrl.u32 2102212464, %v882
        %v892 = vor.u32 %v890, %v891
        %v893 = vshll.u32 2102212464, %v881
        %v894 = vshrl.u32 920167782, %v882
        %v895 = vor.u32 %v893, %v894
        %v896 = vshll.u32 920167782, %v881
        %v897 = vshrl.u32 1326507024, %v882
        %v898 = vor.u32 %v896, %v897
        %vm899 = vcmp.lt.s32.totalorder %v880, 1
        %vm900 = vcmp.lt.s32.totalorder %v880, 2
        %vm901 = vcmp.lt.s32.totalorder %v880, 3
        %vm902 = vcmp.lt.s32.totalorder %v880, 4
        %v903 = vsel %vm899, %v883, %v886
        %v904 = vsel %vm902, %v892, 2102212464
        %v905 = vsel %vm901, %v889, %v904
        %v906 = vsel %vm900, %v903, %v905
        %v907 = vsel %vm899, %v886, %v889
        %v908 = vsel %vm902, %v895, 920167782
        %v909 = vsel %vm901, %v892, %v908
        %v910 = vsel %vm900, %v907, %v909
        %v911 = vsel %vm899, %v889, %v892
        %v912 = vsel %vm902, %v898, 1326507024
        %v913 = vsel %vm901, %v895, %v912
        %v914 = vsel %vm900, %v911, %v913
        %v915 = vshll.u32 %v875, 8
        %v916 = vmul.u32.u64.compose %v915, %v914
        %v917 = vextract.low.u32 %v916
        %v918 = vextract.high.u32 %v916
        %v919 = vmul.u32.u64.compose %v915, %v910
        %v920 = vextract.low.u32 %v919
        %v921 = vextract.high.u32 %v919
        %v922 = vmul.u32 %v915, %v906
        %v923 = vadd.s32 %v918, %v920
        %vm924 = vc.u32 %v918, %v920
        %v925 = vadd.s32 %v921, 1
        %v926 = vsel %vm924, %v925, %v921
        %v927 = vadd.s32 %v922, %v926
        %v928 = vadd.s32 %v927, 536870912
        %v929 = vshrl.u32 %v928, 30
        %v930 = vshll.u32 %v929, 30
        %v931 = vsub.s32 %v927, %v930
        %vm932 = vcmp.lt.s32.totalorder %v931, 0
        %v933 = vsub.s32 0, %v931
        %v934 = vsel %vm932, %v933, %v931
        %v935 = vclz %v934
        %v936 = vsub.s32 %v935, 2
        %vm937 = vcmp.gt.s32.totalorder 0, %v936
        %v938 = vsel %vm937, 0, %v936
        %v939 = vsub.s32 32, %v938
        %v940 = vshll.u32 %v931, %v938
        %v941 = vshrl.u32 %v923, %v939
        %v942 = vor.u32 %v940, %v941
        %v943 = vsub.s32 4294967266, %v938
        %v944 = vadd.s32 %v943, 127
        %v945 = vshll.u32 %v944, 23
        %v946 = vor.u32 4788187, %v945
        %v947 = vand.u32 2147483647, %v946
        %v949 = vcvt.s32.f32 %v942
        %v950 = vmul.f32 %v949, %v947
        %v951 = vxor.u32 %v950, 2147483648
        %v952 = vsel %vm869, %v951, %v950
        %v953 = vsub.s32 4, %v929
        %v954 = vsel %vm869, %v953, %v929
        %v955 = vsel %vm868, %v344, %v952
        %v956 = vsel %vm868, 0, %v954
        %v957 = vcosq.f32.pop %v955
        %v958 = vsinq.f32.pop %v955
        %vm959 = vweird.f32 %v344
        %v960 = vadd.s32 %v956, 3
        %v961 = vand.u32 %v960, 3
        %vm962 = vcmp.lt.s32.totalorder %v961, 2
        %vm963 = vcmp.eq.s32.totalorder %v961, 0
        %v964 = vxor.u32 %v958, 2147483648
        %v965 = vsel %vm963, %v957, %v964
        %vm966 = vcmp.eq.s32.totalorder %v961, 2
        %v967 = vxor.u32 %v957, 2147483648
        %v968 = vsel %vm966, %v967, %v958
        %v969 = vsel %vm962, %v965, %v968
        %v970 = vsel %vm959, nan, %v969
        %v971 = vand.u32 2147483647, %v345
        %vm972 = vcmp.le.f32.partialorder %v971, 0.7853982
        %vm973 = vcmp.lt.s32.totalorder %v345, 0
        %v974 = vand.u32 %v345, 2139095040
        %v975 = vshrl.u32 %v974, 23
        %v976 = vsub.s32 %v975, 127
        %v977 = vand.u32 2147483647, %v345
        %v978 = vand.u32 %v977, 8388607
        %v979 = vor.u32 %v978, 8388608
        %v980 = vsub.s32 0, %v979
        %v981 = vadd.s32 %v976, 1
        %vm982 = vcmp.gt.s32.totalorder %v981, 0
        %v983 = vsel %vm982, %v981, 0
        %v984 = vshrl.u32 %v983, 5
        %v985 = vand.u32 %v983, 31
        %v986 = vsub.s32 32, %v985
        %v987 = vshrl.u32 683565275, %v986
        %v988 = vshll.u32 683565275, %v985
        %v989 = vshrl.u32 2475754826, %v986
        %v990 = vor.u32 %v988, %v989
        %v991 = vshll.u32 2475754826, %v985
        %v992 = vshrl.u32 2131351028, %v986
        %v993 = vor.u32 %v991, %v992
        %v994 = vshll.u32 2131351028, %v985
        %v995 = vshrl.u32 2102212464, %v986
        %v996 = vor.u32 %v994, %v995
        %v997 = vshll.u32 2102212464, %v985
        %v998 = vshrl.u32 920167782, %v986
        %v999 = vor.u32 %v997, %v998
        %v1000 = vshll.u32 920167782, %v985
        %v1001 = vshrl.u32 1326507024, %v986
        %v1002 = vor.u32 %v1000, %v1001
        %vm1003 = vcmp.lt.s32.totalorder %v984, 1
        %vm1004 = vcmp.lt.s32.totalorder %v984, 2
        %vm1005 = vcmp.lt.s32.totalorder %v984, 3
        %vm1006 = vcmp.lt.s32.totalorder %v984, 4
        %v1007 = vsel %vm1003, %v987, %v990
        %v1008 = vsel %vm1006, %v996, 2102212464
        %v1009 = vsel %vm1005, %v993, %v1008
        %v1010 = vsel %vm1004, %v1007, %v1009
        %v1011 = vsel %vm1003, %v990, %v993
        %v1012 = vsel %vm1006, %v999, 920167782
        %v1013 = vsel %vm1005, %v996, %v1012
        %v1014 = vsel %vm1004, %v1011, %v1013
        %v1015 = vsel %vm1003, %v993, %v996
        %v1016 = vsel %vm1006, %v1002, 1326507024
        %v1017 = vsel %vm1005, %v999, %v1016
        %v1018 = vsel %vm1004, %v1015, %v1017
        %v1019 = vshll.u32 %v979, 8
        %v1020 = vmul.u32.u64.compose %v1019, %v1018
        %v1021 = vextract.low.u32 %v1020
        %v1022 = vextract.high.u32 %v1020
        %v1023 = vmul.u32.u64.compose %v1019, %v1014
        %v1024 = vextract.low.u32 %v1023
        %v1025 = vextract.high.u32 %v1023
        %v1026 = vmul.u32 %v1019, %v1010
        %v1027 = vadd.s32 %v1022, %v1024
        %vm1028 = vc.u32 %v1022, %v1024
        %v1029 = vadd.s32 %v1025, 1
        %v1030 = vsel %vm1028, %v1029, %v1025
        %v1031 = vadd.s32 %v1026, %v1030
        %v1032 = vadd.s32 %v1031, 536870912
        %v1033 = vshrl.u32 %v1032, 30
        %v1034 = vshll.u32 %v1033, 30
        %v1035 = vsub.s32 %v1031, %v1034
        %vm1036 = vcmp.lt.s32.totalorder %v1035, 0
        %v1037 = vsub.s32 0, %v1035
        %v1038 = vsel %vm1036, %v1037, %v1035
        %v1039 = vclz %v1038
        %v1040 = vsub.s32 %v1039, 2
        %vm1041 = vcmp.gt.s32.totalorder 0, %v1040
        %v1042 = vsel %vm1041, 0, %v1040
        %v1043 = vsub.s32 32, %v1042
        %v1044 = vshll.u32 %v1035, %v1042
        %v1045 = vshrl.u32 %v1027, %v1043
        %v1046 = vor.u32 %v1044, %v1045
        %v1047 = vsub.s32 4294967266, %v1042
        %v1048 = vadd.s32 %v1047, 127
        %v1049 = vshll.u32 %v1048, 23
        %v1050 = vor.u32 4788187, %v1049
        %v1051 = vand.u32 2147483647, %v1050
        %v1053 = vcvt.s32.f32 %v1046
        %v1054 = vmul.f32 %v1053, %v1051
        %v1055 = vxor.u32 %v1054, 2147483648
        %v1056 = vsel %vm973, %v1055, %v1054
        %v1057 = vsub.s32 4, %v1033
        %v1058 = vsel %vm973, %v1057, %v1033
        %v1059 = vsel %vm972, %v345, %v1056
        %v1060 = vsel %vm972, 0, %v1058
        %v1061 = vcosq.f32.pop %v1059
        %v1062 = vsinq.f32.pop %v1059
        %vm1063 = vweird.f32 %v345
        %v1064 = vadd.s32 %v1060, 3
        %v1065 = vand.u32 %v1064, 3
        %vm1066 = vcmp.lt.s32.totalorder %v1065, 2
        %vm1067 = vcmp.eq.s32.totalorder %v1065, 0
        %v1068 = vxor.u32 %v1062, 2147483648
        %v1069 = vsel %vm1067, %v1061, %v1068
        %vm1070 = vcmp.eq.s32.totalorder %v1065, 2
        %v1071 = vxor.u32 %v1061, 2147483648
        %v1072 = vsel %vm1070, %v1071, %v1062
        %v1073 = vsel %vm1066, %v1069, %v1072
        %v1074 = vsel %vm1063, nan, %v1073
        %v1075 = vand.u32 2147483647, %v346
        %vm1076 = vcmp.le.f32.partialorder %v1075, 0.7853982
        %vm1077 = vcmp.lt.s32.totalorder %v346, 0
        %v1078 = vand.u32 %v346, 2139095040
        %v1079 = vshrl.u32 %v1078, 23
        %v1080 = vsub.s32 %v1079, 127
        %v1081 = vand.u32 2147483647, %v346
        %v1082 = vand.u32 %v1081, 8388607
        %v1083 = vor.u32 %v1082, 8388608
        %v1084 = vsub.s32 0, %v1083
        %v1085 = vadd.s32 %v1080, 1
        %vm1086 = vcmp.gt.s32.totalorder %v1085, 0
        %v1087 = vsel %vm1086, %v1085, 0
        %v1088 = vshrl.u32 %v1087, 5
        %v1089 = vand.u32 %v1087, 31
        %v1090 = vsub.s32 32, %v1089
        %v1091 = vshrl.u32 683565275, %v1090
        %v1092 = vshll.u32 683565275, %v1089
        %v1093 = vshrl.u32 2475754826, %v1090
        %v1094 = vor.u32 %v1092, %v1093
        %v1095 = vshll.u32 2475754826, %v1089
        %v1096 = vshrl.u32 2131351028, %v1090
        %v1097 = vor.u32 %v1095, %v1096
        %v1098 = vshll.u32 2131351028, %v1089
        %v1099 = vshrl.u32 2102212464, %v1090
        %v1100 = vor.u32 %v1098, %v1099
        %v1101 = vshll.u32 2102212464, %v1089
        %v1102 = vshrl.u32 920167782, %v1090
        %v1103 = vor.u32 %v1101, %v1102
        %v1104 = vshll.u32 920167782, %v1089
        %v1105 = vshrl.u32 1326507024, %v1090
        %v1106 = vor.u32 %v1104, %v1105
        %vm1107 = vcmp.lt.s32.totalorder %v1088, 1
        %vm1108 = vcmp.lt.s32.totalorder %v1088, 2
        %vm1109 = vcmp.lt.s32.totalorder %v1088, 3
        %vm1110 = vcmp.lt.s32.totalorder %v1088, 4
        %v1111 = vsel %vm1107, %v1091, %v1094
        %v1112 = vsel %vm1110, %v1100, 2102212464
        %v1113 = vsel %vm1109, %v1097, %v1112
        %v1114 = vsel %vm1108, %v1111, %v1113
        %v1115 = vsel %vm1107, %v1094, %v1097
        %v1116 = vsel %vm1110, %v1103, 920167782
        %v1117 = vsel %vm1109, %v1100, %v1116
        %v1118 = vsel %vm1108, %v1115, %v1117
        %v1119 = vsel %vm1107, %v1097, %v1100
        %v1120 = vsel %vm1110, %v1106, 1326507024
        %v1121 = vsel %vm1109, %v1103, %v1120
        %v1122 = vsel %vm1108, %v1119, %v1121
        %v1123 = vshll.u32 %v1083, 8
        %v1124 = vmul.u32.u64.compose %v1123, %v1122
        %v1125 = vextract.low.u32 %v1124
        %v1126 = vextract.high.u32 %v1124
        %v1127 = vmul.u32.u64.compose %v1123, %v1118
        %v1128 = vextract.low.u32 %v1127
        %v1129 = vextract.high.u32 %v1127
        %v1130 = vmul.u32 %v1123, %v1114
        %v1131 = vadd.s32 %v1126, %v1128
        %vm1132 = vc.u32 %v1126, %v1128
        %v1133 = vadd.s32 %v1129, 1
        %v1134 = vsel %vm1132, %v1133, %v1129
        %v1135 = vadd.s32 %v1130, %v1134
        %v1136 = vadd.s32 %v1135, 536870912
        %v1137 = vshrl.u32 %v1136, 30
        %v1138 = vshll.u32 %v1137, 30
        %v1139 = vsub.s32 %v1135, %v1138
        %vm1140 = vcmp.lt.s32.totalorder %v1139, 0
        %v1141 = vsub.s32 0, %v1139
        %v1142 = vsel %vm1140, %v1141, %v1139
        %v1143 = vclz %v1142
        %v1144 = vsub.s32 %v1143, 2
        %vm1145 = vcmp.gt.s32.totalorder 0, %v1144
        %v1146 = vsel %vm1145, 0, %v1144
        %v1147 = vsub.s32 32, %v1146
        %v1148 = vshll.u32 %v1139, %v1146
        %v1149 = vshrl.u32 %v1131, %v1147
        %v1150 = vor.u32 %v1148, %v1149
        %v1151 = vsub.s32 4294967266, %v1146
        %v1152 = vadd.s32 %v1151, 127
        %v1153 = vshll.u32 %v1152, 23
        %v1154 = vor.u32 4788187, %v1153
        %v1155 = vand.u32 2147483647, %v1154
        %v1157 = vcvt.s32.f32 %v1150
        %v1158 = vmul.f32 %v1157, %v1155
        %v1159 = vxor.u32 %v1158, 2147483648
        %v1160 = vsel %vm1077, %v1159, %v1158
        %v1161 = vsub.s32 4, %v1137
        %v1162 = vsel %vm1077, %v1161, %v1137
        %v1163 = vsel %vm1076, %v346, %v1160
        %v1164 = vsel %vm1076, 0, %v1162
        %v1165 = vcosq.f32.pop %v1163
        %v1166 = vsinq.f32.pop %v1163
        %vm1167 = vweird.f32 %v346
        %v1168 = vadd.s32 %v1164, 3
        %v1169 = vand.u32 %v1168, 3
        %vm1170 = vcmp.lt.s32.totalorder %v1169, 2
        %vm1171 = vcmp.eq.s32.totalorder %v1169, 0
        %v1172 = vxor.u32 %v1166, 2147483648
        %v1173 = vsel %vm1171, %v1165, %v1172
        %vm1174 = vcmp.eq.s32.totalorder %v1169, 2
        %v1175 = vxor.u32 %v1165, 2147483648
        %v1176 = vsel %vm1174, %v1175, %v1166
        %v1177 = vsel %vm1170, %v1173, %v1176
        %v1178 = vsel %vm1167, nan, %v1177
        %v1179 = vand.u32 2147483647, %v339
        %vm1180 = vcmp.le.f32.partialorder %v1179, 0.7853982
        %vm1181 = vcmp.lt.s32.totalorder %v339, 0
        %v1182 = vand.u32 %v339, 2139095040
        %v1183 = vshrl.u32 %v1182, 23
        %v1184 = vsub.s32 %v1183, 127
        %v1185 = vand.u32 2147483647, %v339
        %v1186 = vand.u32 %v1185, 8388607
        %v1187 = vor.u32 %v1186, 8388608
        %v1188 = vsub.s32 0, %v1187
        %v1189 = vadd.s32 %v1184, 1
        %vm1190 = vcmp.gt.s32.totalorder %v1189, 0
        %v1191 = vsel %vm1190, %v1189, 0
        %v1192 = vshrl.u32 %v1191, 5
        %v1193 = vand.u32 %v1191, 31
        %v1194 = vsub.s32 32, %v1193
        %v1195 = vshrl.u32 683565275, %v1194
        %v1196 = vshll.u32 683565275, %v1193
        %v1197 = vshrl.u32 2475754826, %v1194
        %v1198 = vor.u32 %v1196, %v1197
        %v1199 = vshll.u32 2475754826, %v1193
        %v1200 = vshrl.u32 2131351028, %v1194
        %v1201 = vor.u32 %v1199, %v1200
        %v1202 = vshll.u32 2131351028, %v1193
        %v1203 = vshrl.u32 2102212464, %v1194
        %v1204 = vor.u32 %v1202, %v1203
        %v1205 = vshll.u32 2102212464, %v1193
        %v1206 = vshrl.u32 920167782, %v1194
        %v1207 = vor.u32 %v1205, %v1206
        %v1208 = vshll.u32 920167782, %v1193
        %v1209 = vshrl.u32 1326507024, %v1194
        %v1210 = vor.u32 %v1208, %v1209
        %vm1211 = vcmp.lt.s32.totalorder %v1192, 1
        %vm1212 = vcmp.lt.s32.totalorder %v1192, 2
        %vm1213 = vcmp.lt.s32.totalorder %v1192, 3
        %vm1214 = vcmp.lt.s32.totalorder %v1192, 4
        %v1215 = vsel %vm1211, %v1195, %v1198
        %v1216 = vsel %vm1214, %v1204, 2102212464
        %v1217 = vsel %vm1213, %v1201, %v1216
        %v1218 = vsel %vm1212, %v1215, %v1217
        %v1219 = vsel %vm1211, %v1198, %v1201
        %v1220 = vsel %vm1214, %v1207, 920167782
        %v1221 = vsel %vm1213, %v1204, %v1220
        %v1222 = vsel %vm1212, %v1219, %v1221
        %v1223 = vsel %vm1211, %v1201, %v1204
        %v1224 = vsel %vm1214, %v1210, 1326507024
        %v1225 = vsel %vm1213, %v1207, %v1224
        %v1226 = vsel %vm1212, %v1223, %v1225
        %v1227 = vshll.u32 %v1187, 8
        %v1228 = vmul.u32.u64.compose %v1227, %v1226
        %v1229 = vextract.low.u32 %v1228
        %v1230 = vextract.high.u32 %v1228
        %v1231 = vmul.u32.u64.compose %v1227, %v1222
        %v1232 = vextract.low.u32 %v1231
        %v1233 = vextract.high.u32 %v1231
        %v1234 = vmul.u32 %v1227, %v1218
        %v1235 = vadd.s32 %v1230, %v1232
        %vm1236 = vc.u32 %v1230, %v1232
        %v1237 = vadd.s32 %v1233, 1
        %v1238 = vsel %vm1236, %v1237, %v1233
        %v1239 = vadd.s32 %v1234, %v1238
        %v1240 = vadd.s32 %v1239, 536870912
        %v1241 = vshrl.u32 %v1240, 30
        %v1242 = vshll.u32 %v1241, 30
        %v1243 = vsub.s32 %v1239, %v1242
        %vm1244 = vcmp.lt.s32.totalorder %v1243, 0
        %v1245 = vsub.s32 0, %v1243
        %v1246 = vsel %vm1244, %v1245, %v1243
        %v1247 = vclz %v1246
        %v1248 = vsub.s32 %v1247, 2
        %vm1249 = vcmp.gt.s32.totalorder 0, %v1248
        %v1250 = vsel %vm1249, 0, %v1248
        %v1251 = vsub.s32 32, %v1250
        %v1252 = vshll.u32 %v1243, %v1250
        %v1253 = vshrl.u32 %v1235, %v1251
        %v1254 = vor.u32 %v1252, %v1253
        %v1255 = vsub.s32 4294967266, %v1250
        %v1256 = vadd.s32 %v1255, 127
        %v1257 = vshll.u32 %v1256, 23
        %v1258 = vor.u32 4788187, %v1257
        %v1259 = vand.u32 2147483647, %v1258
        %v1261 = vcvt.s32.f32 %v1254
        %v1262 = vmul.f32 %v1261, %v1259
        %v1263 = vxor.u32 %v1262, 2147483648
        %v1264 = vsel %vm1181, %v1263, %v1262
        %v1265 = vsub.s32 4, %v1241
        %v1266 = vsel %vm1181, %v1265, %v1241
        %v1267 = vsel %vm1180, %v339, %v1264
        %v1268 = vsel %vm1180, 0, %v1266
        %v1269 = vcosq.f32.pop %v1267
        %v1270 = vsinq.f32.pop %v1267
        %vm1271 = vweird.f32 %v339
        %v1272 = vand.u32 %v1268, 3
        %vm1273 = vcmp.lt.s32.totalorder %v1272, 2
        %vm1274 = vcmp.eq.s32.totalorder %v1272, 0
        %v1275 = vxor.u32 %v1270, 2147483648
        %v1276 = vsel %vm1274, %v1269, %v1275
        %vm1277 = vcmp.eq.s32.totalorder %v1272, 2
        %v1278 = vxor.u32 %v1269, 2147483648
        %v1279 = vsel %vm1277, %v1278, %v1270
        %v1280 = vsel %vm1273, %v1276, %v1279
        %v1281 = vsel %vm1271, nan, %v1280
        %v1282 = vand.u32 2147483647, %v340
        %vm1283 = vcmp.le.f32.partialorder %v1282, 0.7853982
        %vm1284 = vcmp.lt.s32.totalorder %v340, 0
        %v1285 = vand.u32 %v340, 2139095040
        %v1286 = vshrl.u32 %v1285, 23
        %v1287 = vsub.s32 %v1286, 127
        %v1288 = vand.u32 2147483647, %v340
        %v1289 = vand.u32 %v1288, 8388607
        %v1290 = vor.u32 %v1289, 8388608
        %v1291 = vsub.s32 0, %v1290
        %v1292 = vadd.s32 %v1287, 1
        %vm1293 = vcmp.gt.s32.totalorder %v1292, 0
        %v1294 = vsel %vm1293, %v1292, 0
        %v1295 = vshrl.u32 %v1294, 5
        %v1296 = vand.u32 %v1294, 31
        %v1297 = vsub.s32 32, %v1296
        %v1298 = vshrl.u32 683565275, %v1297
        %v1299 = vshll.u32 683565275, %v1296
        %v1300 = vshrl.u32 2475754826, %v1297
        %v1301 = vor.u32 %v1299, %v1300
        %v1302 = vshll.u32 2475754826, %v1296
        %v1303 = vshrl.u32 2131351028, %v1297
        %v1304 = vor.u32 %v1302, %v1303
        %v1305 = vshll.u32 2131351028, %v1296
        %v1306 = vshrl.u32 2102212464, %v1297
        %v1307 = vor.u32 %v1305, %v1306
        %v1308 = vshll.u32 2102212464, %v1296
        %v1309 = vshrl.u32 920167782, %v1297
        %v1310 = vor.u32 %v1308, %v1309
        %v1311 = vshll.u32 920167782, %v1296
        %v1312 = vshrl.u32 1326507024, %v1297
        %v1313 = vor.u32 %v1311, %v1312
        %vm1314 = vcmp.lt.s32.totalorder %v1295, 1
        %vm1315 = vcmp.lt.s32.totalorder %v1295, 2
        %vm1316 = vcmp.lt.s32.totalorder %v1295, 3
        %vm1317 = vcmp.lt.s32.totalorder %v1295, 4
        %v1318 = vsel %vm1314, %v1298, %v1301
        %v1319 = vsel %vm1317, %v1307, 2102212464
        %v1320 = vsel %vm1316, %v1304, %v1319
        %v1321 = vsel %vm1315, %v1318, %v1320
        %v1322 = vsel %vm1314, %v1301, %v1304
        %v1323 = vsel %vm1317, %v1310, 920167782
        %v1324 = vsel %vm1316, %v1307, %v1323
        %v1325 = vsel %vm1315, %v1322, %v1324
        %v1326 = vsel %vm1314, %v1304, %v1307
        %v1327 = vsel %vm1317, %v1313, 1326507024
        %v1328 = vsel %vm1316, %v1310, %v1327
        %v1329 = vsel %vm1315, %v1326, %v1328
        %v1330 = vshll.u32 %v1290, 8
        %v1331 = vmul.u32.u64.compose %v1330, %v1329
        %v1332 = vextract.low.u32 %v1331
        %v1333 = vextract.high.u32 %v1331
        %v1334 = vmul.u32.u64.compose %v1330, %v1325
        %v1335 = vextract.low.u32 %v1334
        %v1336 = vextract.high.u32 %v1334
        %v1337 = vmul.u32 %v1330, %v1321
        %v1338 = vadd.s32 %v1333, %v1335
        %vm1339 = vc.u32 %v1333, %v1335
        %v1340 = vadd.s32 %v1336, 1
        %v1341 = vsel %vm1339, %v1340, %v1336
        %v1342 = vadd.s32 %v1337, %v1341
        %v1343 = vadd.s32 %v1342, 536870912
        %v1344 = vshrl.u32 %v1343, 30
        %v1345 = vshll.u32 %v1344, 30
        %v1346 = vsub.s32 %v1342, %v1345
        %vm1347 = vcmp.lt.s32.totalorder %v1346, 0
        %v1348 = vsub.s32 0, %v1346
        %v1349 = vsel %vm1347, %v1348, %v1346
        %v1350 = vclz %v1349
        %v1351 = vsub.s32 %v1350, 2
        %vm1352 = vcmp.gt.s32.totalorder 0, %v1351
        %v1353 = vsel %vm1352, 0, %v1351
        %v1354 = vsub.s32 32, %v1353
        %v1355 = vshll.u32 %v1346, %v1353
        %v1356 = vshrl.u32 %v1338, %v1354
        %v1357 = vor.u32 %v1355, %v1356
        %v1358 = vsub.s32 4294967266, %v1353
        %v1359 = vadd.s32 %v1358, 127
        %v1360 = vshll.u32 %v1359, 23
        %v1361 = vor.u32 4788187, %v1360
        %v1362 = vand.u32 2147483647, %v1361
        %v1364 = vcvt.s32.f32 %v1357
        %v1365 = vmul.f32 %v1364, %v1362
        %v1366 = vxor.u32 %v1365, 2147483648
        %v1367 = vsel %vm1284, %v1366, %v1365
        %v1368 = vsub.s32 4, %v1344
        %v1369 = vsel %vm1284, %v1368, %v1344
        %v1370 = vsel %vm1283, %v340, %v1367
        %v1371 = vsel %vm1283, 0, %v1369
        %v1372 = vcosq.f32.pop %v1370
        %v1373 = vsinq.f32.pop %v1370
        %vm1374 = vweird.f32 %v340
        %v1375 = vand.u32 %v1371, 3
        %vm1376 = vcmp.lt.s32.totalorder %v1375, 2
        %vm1377 = vcmp.eq.s32.totalorder %v1375, 0
        %v1378 = vxor.u32 %v1373, 2147483648
        %v1379 = vsel %vm1377, %v1372, %v1378
        %vm1380 = vcmp.eq.s32.totalorder %v1375, 2
        %v1381 = vxor.u32 %v1372, 2147483648
        %v1382 = vsel %vm1380, %v1381, %v1373
        %v1383 = vsel %vm1376, %v1379, %v1382
        %v1384 = vsel %vm1374, nan, %v1383
        %v1385 = vand.u32 2147483647, %v341
        %vm1386 = vcmp.le.f32.partialorder %v1385, 0.7853982
        %vm1387 = vcmp.lt.s32.totalorder %v341, 0
        %v1388 = vand.u32 %v341, 2139095040
        %v1389 = vshrl.u32 %v1388, 23
        %v1390 = vsub.s32 %v1389, 127
        %v1391 = vand.u32 2147483647, %v341
        %v1392 = vand.u32 %v1391, 8388607
        %v1393 = vor.u32 %v1392, 8388608
        %v1394 = vsub.s32 0, %v1393
        %v1395 = vadd.s32 %v1390, 1
        %vm1396 = vcmp.gt.s32.totalorder %v1395, 0
        %v1397 = vsel %vm1396, %v1395, 0
        %v1398 = vshrl.u32 %v1397, 5
        %v1399 = vand.u32 %v1397, 31
        %v1400 = vsub.s32 32, %v1399
        %v1401 = vshrl.u32 683565275, %v1400
        %v1402 = vshll.u32 683565275, %v1399
        %v1403 = vshrl.u32 2475754826, %v1400
        %v1404 = vor.u32 %v1402, %v1403
        %v1405 = vshll.u32 2475754826, %v1399
        %v1406 = vshrl.u32 2131351028, %v1400
        %v1407 = vor.u32 %v1405, %v1406
        %v1408 = vshll.u32 2131351028, %v1399
        %v1409 = vshrl.u32 2102212464, %v1400
        %v1410 = vor.u32 %v1408, %v1409
        %v1411 = vshll.u32 2102212464, %v1399
        %v1412 = vshrl.u32 920167782, %v1400
        %v1413 = vor.u32 %v1411, %v1412
        %v1414 = vshll.u32 920167782, %v1399
        %v1415 = vshrl.u32 1326507024, %v1400
        %v1416 = vor.u32 %v1414, %v1415
        %vm1417 = vcmp.lt.s32.totalorder %v1398, 1
        %vm1418 = vcmp.lt.s32.totalorder %v1398, 2
        %vm1419 = vcmp.lt.s32.totalorder %v1398, 3
        %vm1420 = vcmp.lt.s32.totalorder %v1398, 4
        %v1421 = vsel %vm1417, %v1401, %v1404
        %v1422 = vsel %vm1420, %v1410, 2102212464
        %v1423 = vsel %vm1419, %v1407, %v1422
        %v1424 = vsel %vm1418, %v1421, %v1423
        %v1425 = vsel %vm1417, %v1404, %v1407
        %v1426 = vsel %vm1420, %v1413, 920167782
        %v1427 = vsel %vm1419, %v1410, %v1426
        %v1428 = vsel %vm1418, %v1425, %v1427
        %v1429 = vsel %vm1417, %v1407, %v1410
        %v1430 = vsel %vm1420, %v1416, 1326507024
        %v1431 = vsel %vm1419, %v1413, %v1430
        %v1432 = vsel %vm1418, %v1429, %v1431
        %v1433 = vshll.u32 %v1393, 8
        %v1434 = vmul.u32.u64.compose %v1433, %v1432
        %v1435 = vextract.low.u32 %v1434
        %v1436 = vextract.high.u32 %v1434
        %v1437 = vmul.u32.u64.compose %v1433, %v1428
        %v1438 = vextract.low.u32 %v1437
        %v1439 = vextract.high.u32 %v1437
        %v1440 = vmul.u32 %v1433, %v1424
        %v1441 = vadd.s32 %v1436, %v1438
        %vm1442 = vc.u32 %v1436, %v1438
        %v1443 = vadd.s32 %v1439, 1
        %v1444 = vsel %vm1442, %v1443, %v1439
        %v1445 = vadd.s32 %v1440, %v1444
        %v1446 = vadd.s32 %v1445, 536870912
        %v1447 = vshrl.u32 %v1446, 30
        %v1448 = vshll.u32 %v1447, 30
        %v1449 = vsub.s32 %v1445, %v1448
        %vm1450 = vcmp.lt.s32.totalorder %v1449, 0
        %v1451 = vsub.s32 0, %v1449
        %v1452 = vsel %vm1450, %v1451, %v1449
        %v1453 = vclz %v1452
        %v1454 = vsub.s32 %v1453, 2
        %vm1455 = vcmp.gt.s32.totalorder 0, %v1454
        %v1456 = vsel %vm1455, 0, %v1454
        %v1457 = vsub.s32 32, %v1456
        %v1458 = vshll.u32 %v1449, %v1456
        %v1459 = vshrl.u32 %v1441, %v1457
        %v1460 = vor.u32 %v1458, %v1459
        %v1461 = vsub.s32 4294967266, %v1456
        %v1462 = vadd.s32 %v1461, 127
        %v1463 = vshll.u32 %v1462, 23
        %v1464 = vor.u32 4788187, %v1463
        %v1465 = vand.u32 2147483647, %v1464
        %v1467 = vcvt.s32.f32 %v1460
        %v1468 = vmul.f32 %v1467, %v1465
        %v1469 = vxor.u32 %v1468, 2147483648
        %v1470 = vsel %vm1387, %v1469, %v1468
        %v1471 = vsub.s32 4, %v1447
        %v1472 = vsel %vm1387, %v1471, %v1447
        %v1473 = vsel %vm1386, %v341, %v1470
        %v1474 = vsel %vm1386, 0, %v1472
        %v1475 = vcosq.f32.pop %v1473
        %v1476 = vsinq.f32.pop %v1473
        %vm1477 = vweird.f32 %v341
        %v1478 = vand.u32 %v1474, 3
        %vm1479 = vcmp.lt.s32.totalorder %v1478, 2
        %vm1480 = vcmp.eq.s32.totalorder %v1478, 0
        %v1481 = vxor.u32 %v1476, 2147483648
        %v1482 = vsel %vm1480, %v1475, %v1481
        %vm1483 = vcmp.eq.s32.totalorder %v1478, 2
        %v1484 = vxor.u32 %v1475, 2147483648
        %v1485 = vsel %vm1483, %v1484, %v1476
        %v1486 = vsel %vm1479, %v1482, %v1485
        %v1487 = vsel %vm1477, nan, %v1486
        %v1488 = vand.u32 2147483647, %v342
        %vm1489 = vcmp.le.f32.partialorder %v1488, 0.7853982
        %vm1490 = vcmp.lt.s32.totalorder %v342, 0
        %v1491 = vand.u32 %v342, 2139095040
        %v1492 = vshrl.u32 %v1491, 23
        %v1493 = vsub.s32 %v1492, 127
        %v1494 = vand.u32 2147483647, %v342
        %v1495 = vand.u32 %v1494, 8388607
        %v1496 = vor.u32 %v1495, 8388608
        %v1497 = vsub.s32 0, %v1496
        %v1498 = vadd.s32 %v1493, 1
        %vm1499 = vcmp.gt.s32.totalorder %v1498, 0
        %v1500 = vsel %vm1499, %v1498, 0
        %v1501 = vshrl.u32 %v1500, 5
        %v1502 = vand.u32 %v1500, 31
        %v1503 = vsub.s32 32, %v1502
        %v1504 = vshrl.u32 683565275, %v1503
        %v1505 = vshll.u32 683565275, %v1502
        %v1506 = vshrl.u32 2475754826, %v1503
        %v1507 = vor.u32 %v1505, %v1506
        %v1508 = vshll.u32 2475754826, %v1502
        %v1509 = vshrl.u32 2131351028, %v1503
        %v1510 = vor.u32 %v1508, %v1509
        %v1511 = vshll.u32 2131351028, %v1502
        %v1512 = vshrl.u32 2102212464, %v1503
        %v1513 = vor.u32 %v1511, %v1512
        %v1514 = vshll.u32 2102212464, %v1502
        %v1515 = vshrl.u32 920167782, %v1503
        %v1516 = vor.u32 %v1514, %v1515
        %v1517 = vshll.u32 920167782, %v1502
        %v1518 = vshrl.u32 1326507024, %v1503
        %v1519 = vor.u32 %v1517, %v1518
        %vm1520 = vcmp.lt.s32.totalorder %v1501, 1
        %vm1521 = vcmp.lt.s32.totalorder %v1501, 2
        %vm1522 = vcmp.lt.s32.totalorder %v1501, 3
        %vm1523 = vcmp.lt.s32.totalorder %v1501, 4
        %v1524 = vsel %vm1520, %v1504, %v1507
        %v1525 = vsel %vm1523, %v1513, 2102212464
        %v1526 = vsel %vm1522, %v1510, %v1525
        %v1527 = vsel %vm1521, %v1524, %v1526
        %v1528 = vsel %vm1520, %v1507, %v1510
        %v1529 = vsel %vm1523, %v1516, 920167782
        %v1530 = vsel %vm1522, %v1513, %v1529
        %v1531 = vsel %vm1521, %v1528, %v1530
        %v1532 = vsel %vm1520, %v1510, %v1513
        %v1533 = vsel %vm1523, %v1519, 1326507024
        %v1534 = vsel %vm1522, %v1516, %v1533
        %v1535 = vsel %vm1521, %v1532, %v1534
        %v1536 = vshll.u32 %v1496, 8
        %v1537 = vmul.u32.u64.compose %v1536, %v1535
        %v1538 = vextract.low.u32 %v1537
        %v1539 = vextract.high.u32 %v1537
        %v1540 = vmul.u32.u64.compose %v1536, %v1531
        %v1541 = vextract.low.u32 %v1540
        %v1542 = vextract.high.u32 %v1540
        %v1543 = vmul.u32 %v1536, %v1527
        %v1544 = vadd.s32 %v1539, %v1541
        %vm1545 = vc.u32 %v1539, %v1541
        %v1546 = vadd.s32 %v1542, 1
        %v1547 = vsel %vm1545, %v1546, %v1542
        %v1548 = vadd.s32 %v1543, %v1547
        %v1549 = vadd.s32 %v1548, 536870912
        %v1550 = vshrl.u32 %v1549, 30
        %v1551 = vshll.u32 %v1550, 30
        %v1552 = vsub.s32 %v1548, %v1551
        %vm1553 = vcmp.lt.s32.totalorder %v1552, 0
        %v1554 = vsub.s32 0, %v1552
        %v1555 = vsel %vm1553, %v1554, %v1552
        %v1556 = vclz %v1555
        %v1557 = vsub.s32 %v1556, 2
        %vm1558 = vcmp.gt.s32.totalorder 0, %v1557
        %v1559 = vsel %vm1558, 0, %v1557
        %v1560 = vsub.s32 32, %v1559
        %v1561 = vshll.u32 %v1552, %v1559
        %v1562 = vshrl.u32 %v1544, %v1560
        %v1563 = vor.u32 %v1561, %v1562
        %v1564 = vsub.s32 4294967266, %v1559
        %v1565 = vadd.s32 %v1564, 127
        %v1566 = vshll.u32 %v1565, 23
        %v1567 = vor.u32 4788187, %v1566
        %v1568 = vand.u32 2147483647, %v1567
        %v1570 = vcvt.s32.f32 %v1563
        %v1571 = vmul.f32 %v1570, %v1568
        %v1572 = vxor.u32 %v1571, 2147483648
        %v1573 = vsel %vm1490, %v1572, %v1571
        %v1574 = vsub.s32 4, %v1550
        %v1575 = vsel %vm1490, %v1574, %v1550
        %v1576 = vsel %vm1489, %v342, %v1573
        %v1577 = vsel %vm1489, 0, %v1575
        %v1578 = vcosq.f32.pop %v1576
        %v1579 = vsinq.f32.pop %v1576
        %vm1580 = vweird.f32 %v342
        %v1581 = vand.u32 %v1577, 3
        %vm1582 = vcmp.lt.s32.totalorder %v1581, 2
        %vm1583 = vcmp.eq.s32.totalorder %v1581, 0
        %v1584 = vxor.u32 %v1579, 2147483648
        %v1585 = vsel %vm1583, %v1578, %v1584
        %vm1586 = vcmp.eq.s32.totalorder %v1581, 2
        %v1587 = vxor.u32 %v1578, 2147483648
        %v1588 = vsel %vm1586, %v1587, %v1579
        %v1589 = vsel %vm1582, %v1585, %v1588
        %v1590 = vsel %vm1580, nan, %v1589
        %v1591 = vand.u32 2147483647, %v343
        %vm1592 = vcmp.le.f32.partialorder %v1591, 0.7853982
        %vm1593 = vcmp.lt.s32.totalorder %v343, 0
        %v1594 = vand.u32 %v343, 2139095040
        %v1595 = vshrl.u32 %v1594, 23
        %v1596 = vsub.s32 %v1595, 127
        %v1597 = vand.u32 2147483647, %v343
        %v1598 = vand.u32 %v1597, 8388607
        %v1599 = vor.u32 %v1598, 8388608
        %v1600 = vsub.s32 0, %v1599
        %v1601 = vadd.s32 %v1596, 1
        %vm1602 = vcmp.gt.s32.totalorder %v1601, 0
        %v1603 = vsel %vm1602, %v1601, 0
        %v1604 = vshrl.u32 %v1603, 5
        %v1605 = vand.u32 %v1603, 31
        %v1606 = vsub.s32 32, %v1605
        %v1607 = vshrl.u32 683565275, %v1606
        %v1608 = vshll.u32 683565275, %v1605
        %v1609 = vshrl.u32 2475754826, %v1606
        %v1610 = vor.u32 %v1608, %v1609
        %v1611 = vshll.u32 2475754826, %v1605
        %v1612 = vshrl.u32 2131351028, %v1606
        %v1613 = vor.u32 %v1611, %v1612
        %v1614 = vshll.u32 2131351028, %v1605
        %v1615 = vshrl.u32 2102212464, %v1606
        %v1616 = vor.u32 %v1614, %v1615
        %v1617 = vshll.u32 2102212464, %v1605
        %v1618 = vshrl.u32 920167782, %v1606
        %v1619 = vor.u32 %v1617, %v1618
        %v1620 = vshll.u32 920167782, %v1605
        %v1621 = vshrl.u32 1326507024, %v1606
        %v1622 = vor.u32 %v1620, %v1621
        %vm1623 = vcmp.lt.s32.totalorder %v1604, 1
        %vm1624 = vcmp.lt.s32.totalorder %v1604, 2
        %vm1625 = vcmp.lt.s32.totalorder %v1604, 3
        %vm1626 = vcmp.lt.s32.totalorder %v1604, 4
        %v1627 = vsel %vm1623, %v1607, %v1610
        %v1628 = vsel %vm1626, %v1616, 2102212464
        %v1629 = vsel %vm1625, %v1613, %v1628
        %v1630 = vsel %vm1624, %v1627, %v1629
        %v1631 = vsel %vm1623, %v1610, %v1613
        %v1632 = vsel %vm1626, %v1619, 920167782
        %v1633 = vsel %vm1625, %v1616, %v1632
        %v1634 = vsel %vm1624, %v1631, %v1633
        %v1635 = vsel %vm1623, %v1613, %v1616
        %v1636 = vsel %vm1626, %v1622, 1326507024
        %v1637 = vsel %vm1625, %v1619, %v1636
        %v1638 = vsel %vm1624, %v1635, %v1637
        %v1639 = vshll.u32 %v1599, 8
        %v1640 = vmul.u32.u64.compose %v1639, %v1638
        %v1641 = vextract.low.u32 %v1640
        %v1642 = vextract.high.u32 %v1640
        %v1643 = vmul.u32.u64.compose %v1639, %v1634
        %v1644 = vextract.low.u32 %v1643
        %v1645 = vextract.high.u32 %v1643
        %v1646 = vmul.u32 %v1639, %v1630
        %v1647 = vadd.s32 %v1642, %v1644
        %vm1648 = vc.u32 %v1642, %v1644
        %v1649 = vadd.s32 %v1645, 1
        %v1650 = vsel %vm1648, %v1649, %v1645
        %v1651 = vadd.s32 %v1646, %v1650
        %v1652 = vadd.s32 %v1651, 536870912
        %v1653 = vshrl.u32 %v1652, 30
        %v1654 = vshll.u32 %v1653, 30
        %v1655 = vsub.s32 %v1651, %v1654
        %vm1656 = vcmp.lt.s32.totalorder %v1655, 0
        %v1657 = vsub.s32 0, %v1655
        %v1658 = vsel %vm1656, %v1657, %v1655
        %v1659 = vclz %v1658
        %v1660 = vsub.s32 %v1659, 2
        %vm1661 = vcmp.gt.s32.totalorder 0, %v1660
        %v1662 = vsel %vm1661, 0, %v1660
        %v1663 = vsub.s32 32, %v1662
        %v1664 = vshll.u32 %v1655, %v1662
        %v1665 = vshrl.u32 %v1647, %v1663
        %v1666 = vor.u32 %v1664, %v1665
        %v1667 = vsub.s32 4294967266, %v1662
        %v1668 = vadd.s32 %v1667, 127
        %v1669 = vshll.u32 %v1668, 23
        %v1670 = vor.u32 4788187, %v1669
        %v1671 = vand.u32 2147483647, %v1670
        %v1673 = vcvt.s32.f32 %v1666
        %v1674 = vmul.f32 %v1673, %v1671
        %v1675 = vxor.u32 %v1674, 2147483648
        %v1676 = vsel %vm1593, %v1675, %v1674
        %v1677 = vsub.s32 4, %v1653
        %v1678 = vsel %vm1593, %v1677, %v1653
        %v1679 = vsel %vm1592, %v343, %v1676
        %v1680 = vsel %vm1592, 0, %v1678
        %v1681 = vcosq.f32.pop %v1679
        %v1682 = vsinq.f32.pop %v1679
        %vm1683 = vweird.f32 %v343
        %v1684 = vand.u32 %v1680, 3
        %vm1685 = vcmp.lt.s32.totalorder %v1684, 2
        %vm1686 = vcmp.eq.s32.totalorder %v1684, 0
        %v1687 = vxor.u32 %v1682, 2147483648
        %v1688 = vsel %vm1686, %v1681, %v1687
        %vm1689 = vcmp.eq.s32.totalorder %v1684, 2
        %v1690 = vxor.u32 %v1681, 2147483648
        %v1691 = vsel %vm1689, %v1690, %v1682
        %v1692 = vsel %vm1685, %v1688, %v1691
        %v1693 = vsel %vm1683, nan, %v1692
        %v1694 = vand.u32 2147483647, %v344
        %vm1695 = vcmp.le.f32.partialorder %v1694, 0.7853982
        %vm1696 = vcmp.lt.s32.totalorder %v344, 0
        %v1697 = vand.u32 %v344, 2139095040
        %v1698 = vshrl.u32 %v1697, 23
        %v1699 = vsub.s32 %v1698, 127
        %v1700 = vand.u32 2147483647, %v344
        %v1701 = vand.u32 %v1700, 8388607
        %v1702 = vor.u32 %v1701, 8388608
        %v1703 = vsub.s32 0, %v1702
        %v1704 = vadd.s32 %v1699, 1
        %vm1705 = vcmp.gt.s32.totalorder %v1704, 0
        %v1706 = vsel %vm1705, %v1704, 0
        %v1707 = vshrl.u32 %v1706, 5
        %v1708 = vand.u32 %v1706, 31
        %v1709 = vsub.s32 32, %v1708
        %v1710 = vshrl.u32 683565275, %v1709
        %v1711 = vshll.u32 683565275, %v1708
        %v1712 = vshrl.u32 2475754826, %v1709
        %v1713 = vor.u32 %v1711, %v1712
        %v1714 = vshll.u32 2475754826, %v1708
        %v1715 = vshrl.u32 2131351028, %v1709
        %v1716 = vor.u32 %v1714, %v1715
        %v1717 = vshll.u32 2131351028, %v1708
        %v1718 = vshrl.u32 2102212464, %v1709
        %v1719 = vor.u32 %v1717, %v1718
        %v1720 = vshll.u32 2102212464, %v1708
        %v1721 = vshrl.u32 920167782, %v1709
        %v1722 = vor.u32 %v1720, %v1721
        %v1723 = vshll.u32 920167782, %v1708
        %v1724 = vshrl.u32 1326507024, %v1709
        %v1725 = vor.u32 %v1723, %v1724
        %vm1726 = vcmp.lt.s32.totalorder %v1707, 1
        %vm1727 = vcmp.lt.s32.totalorder %v1707, 2
        %vm1728 = vcmp.lt.s32.totalorder %v1707, 3
        %vm1729 = vcmp.lt.s32.totalorder %v1707, 4
        %v1730 = vsel %vm1726, %v1710, %v1713
        %v1731 = vsel %vm1729, %v1719, 2102212464
        %v1732 = vsel %vm1728, %v1716, %v1731
        %v1733 = vsel %vm1727, %v1730, %v1732
        %v1734 = vsel %vm1726, %v1713, %v1716
        %v1735 = vsel %vm1729, %v1722, 920167782
        %v1736 = vsel %vm1728, %v1719, %v1735
        %v1737 = vsel %vm1727, %v1734, %v1736
        %v1738 = vsel %vm1726, %v1716, %v1719
        %v1739 = vsel %vm1729, %v1725, 1326507024
        %v1740 = vsel %vm1728, %v1722, %v1739
        %v1741 = vsel %vm1727, %v1738, %v1740
        %v1742 = vshll.u32 %v1702, 8
        %v1743 = vmul.u32.u64.compose %v1742, %v1741
        %v1744 = vextract.low.u32 %v1743
        %v1745 = vextract.high.u32 %v1743
        %v1746 = vmul.u32.u64.compose %v1742, %v1737
        %v1747 = vextract.low.u32 %v1746
        %v1748 = vextract.high.u32 %v1746
        %v1749 = vmul.u32 %v1742, %v1733
        %v1750 = vadd.s32 %v1745, %v1747
        %vm1751 = vc.u32 %v1745, %v1747
        %v1752 = vadd.s32 %v1748, 1
        %v1753 = vsel %vm1751, %v1752, %v1748
        %v1754 = vadd.s32 %v1749, %v1753
        %v1755 = vadd.s32 %v1754, 536870912
        %v1756 = vshrl.u32 %v1755, 30
        %v1757 = vshll.u32 %v1756, 30
        %v1758 = vsub.s32 %v1754, %v1757
        %vm1759 = vcmp.lt.s32.totalorder %v1758, 0
        %v1760 = vsub.s32 0, %v1758
        %v1761 = vsel %vm1759, %v1760, %v1758
        %v1762 = vclz %v1761
        %v1763 = vsub.s32 %v1762, 2
        %vm1764 = vcmp.gt.s32.totalorder 0, %v1763
        %v1765 = vsel %vm1764, 0, %v1763
        %v1766 = vsub.s32 32, %v1765
        %v1767 = vshll.u32 %v1758, %v1765
        %v1768 = vshrl.u32 %v1750, %v1766
        %v1769 = vor.u32 %v1767, %v1768
        %v1770 = vsub.s32 4294967266, %v1765
        %v1771 = vadd.s32 %v1770, 127
        %v1772 = vshll.u32 %v1771, 23
        %v1773 = vor.u32 4788187, %v1772
        %v1774 = vand.u32 2147483647, %v1773
        %v1776 = vcvt.s32.f32 %v1769
        %v1777 = vmul.f32 %v1776, %v1774
        %v1778 = vxor.u32 %v1777, 2147483648
        %v1779 = vsel %vm1696, %v1778, %v1777
        %v1780 = vsub.s32 4, %v1756
        %v1781 = vsel %vm1696, %v1780, %v1756
        %v1782 = vsel %vm1695, %v344, %v1779
        %v1783 = vsel %vm1695, 0, %v1781
        %v1784 = vcosq.f32.pop %v1782
        %v1785 = vsinq.f32.pop %v1782
        %vm1786 = vweird.f32 %v344
        %v1787 = vand.u32 %v1783, 3
        %vm1788 = vcmp.lt.s32.totalorder %v1787, 2
        %vm1789 = vcmp.eq.s32.totalorder %v1787, 0
        %v1790 = vxor.u32 %v1785, 2147483648
        %v1791 = vsel %vm1789, %v1784, %v1790
        %vm1792 = vcmp.eq.s32.totalorder %v1787, 2
        %v1793 = vxor.u32 %v1784, 2147483648
        %v1794 = vsel %vm1792, %v1793, %v1785
        %v1795 = vsel %vm1788, %v1791, %v1794
        %v1796 = vsel %vm1786, nan, %v1795
        %v1797 = vand.u32 2147483647, %v345
        %vm1798 = vcmp.le.f32.partialorder %v1797, 0.7853982
        %vm1799 = vcmp.lt.s32.totalorder %v345, 0
        %v1800 = vand.u32 %v345, 2139095040
        %v1801 = vshrl.u32 %v1800, 23
        %v1802 = vsub.s32 %v1801, 127
        %v1803 = vand.u32 2147483647, %v345
        %v1804 = vand.u32 %v1803, 8388607
        %v1805 = vor.u32 %v1804, 8388608
        %v1806 = vsub.s32 0, %v1805
        %v1807 = vadd.s32 %v1802, 1
        %vm1808 = vcmp.gt.s32.totalorder %v1807, 0
        %v1809 = vsel %vm1808, %v1807, 0
        %v1810 = vshrl.u32 %v1809, 5
        %v1811 = vand.u32 %v1809, 31
        %v1812 = vsub.s32 32, %v1811
        %v1813 = vshrl.u32 683565275, %v1812
        %v1814 = vshll.u32 683565275, %v1811
        %v1815 = vshrl.u32 2475754826, %v1812
        %v1816 = vor.u32 %v1814, %v1815
        %v1817 = vshll.u32 2475754826, %v1811
        %v1818 = vshrl.u32 2131351028, %v1812
        %v1819 = vor.u32 %v1817, %v1818
        %v1820 = vshll.u32 2131351028, %v1811
        %v1821 = vshrl.u32 2102212464, %v1812
        %v1822 = vor.u32 %v1820, %v1821
        %v1823 = vshll.u32 2102212464, %v1811
        %v1824 = vshrl.u32 920167782, %v1812
        %v1825 = vor.u32 %v1823, %v1824
        %v1826 = vshll.u32 920167782, %v1811
        %v1827 = vshrl.u32 1326507024, %v1812
        %v1828 = vor.u32 %v1826, %v1827
        %vm1829 = vcmp.lt.s32.totalorder %v1810, 1
        %vm1830 = vcmp.lt.s32.totalorder %v1810, 2
        %vm1831 = vcmp.lt.s32.totalorder %v1810, 3
        %vm1832 = vcmp.lt.s32.totalorder %v1810, 4
        %v1833 = vsel %vm1829, %v1813, %v1816
        %v1834 = vsel %vm1832, %v1822, 2102212464
        %v1835 = vsel %vm1831, %v1819, %v1834
        %v1836 = vsel %vm1830, %v1833, %v1835
        %v1837 = vsel %vm1829, %v1816, %v1819
        %v1838 = vsel %vm1832, %v1825, 920167782
        %v1839 = vsel %vm1831, %v1822, %v1838
        %v1840 = vsel %vm1830, %v1837, %v1839
        %v1841 = vsel %vm1829, %v1819, %v1822
        %v1842 = vsel %vm1832, %v1828, 1326507024
        %v1843 = vsel %vm1831, %v1825, %v1842
        %v1844 = vsel %vm1830, %v1841, %v1843
        %v1845 = vshll.u32 %v1805, 8
        %v1846 = vmul.u32.u64.compose %v1845, %v1844
        %v1847 = vextract.low.u32 %v1846
        %v1848 = vextract.high.u32 %v1846
        %v1849 = vmul.u32.u64.compose %v1845, %v1840
        %v1850 = vextract.low.u32 %v1849
        %v1851 = vextract.high.u32 %v1849
        %v1852 = vmul.u32 %v1845, %v1836
        %v1853 = vadd.s32 %v1848, %v1850
        %vm1854 = vc.u32 %v1848, %v1850
        %v1855 = vadd.s32 %v1851, 1
        %v1856 = vsel %vm1854, %v1855, %v1851
        %v1857 = vadd.s32 %v1852, %v1856
        %v1858 = vadd.s32 %v1857, 536870912
        %v1859 = vshrl.u32 %v1858, 30
        %v1860 = vshll.u32 %v1859, 30
        %v1861 = vsub.s32 %v1857, %v1860
        %vm1862 = vcmp.lt.s32.totalorder %v1861, 0
        %v1863 = vsub.s32 0, %v1861
        %v1864 = vsel %vm1862, %v1863, %v1861
        %v1865 = vclz %v1864
        %v1866 = vsub.s32 %v1865, 2
        %vm1867 = vcmp.gt.s32.totalorder 0, %v1866
        %v1868 = vsel %vm1867, 0, %v1866
        %v1869 = vsub.s32 32, %v1868
        %v1870 = vshll.u32 %v1861, %v1868
        %v1871 = vshrl.u32 %v1853, %v1869
        %v1872 = vor.u32 %v1870, %v1871
        %v1873 = vsub.s32 4294967266, %v1868
        %v1874 = vadd.s32 %v1873, 127
        %v1875 = vshll.u32 %v1874, 23
        %v1876 = vor.u32 4788187, %v1875
        %v1877 = vand.u32 2147483647, %v1876
        %v1879 = vcvt.s32.f32 %v1872
        %v1880 = vmul.f32 %v1879, %v1877
        %v1881 = vxor.u32 %v1880, 2147483648
        %v1882 = vsel %vm1799, %v1881, %v1880
        %v1883 = vsub.s32 4, %v1859
        %v1884 = vsel %vm1799, %v1883, %v1859
        %v1885 = vsel %vm1798, %v345, %v1882
        %v1886 = vsel %vm1798, 0, %v1884
        %v1887 = vcosq.f32.pop %v1885
        %v1888 = vsinq.f32.pop %v1885
        %vm1889 = vweird.f32 %v345
        %v1890 = vand.u32 %v1886, 3
        %vm1891 = vcmp.lt.s32.totalorder %v1890, 2
        %vm1892 = vcmp.eq.s32.totalorder %v1890, 0
        %v1893 = vxor.u32 %v1888, 2147483648
        %v1894 = vsel %vm1892, %v1887, %v1893
        %vm1895 = vcmp.eq.s32.totalorder %v1890, 2
        %v1896 = vxor.u32 %v1887, 2147483648
        %v1897 = vsel %vm1895, %v1896, %v1888
        %v1898 = vsel %vm1891, %v1894, %v1897
        %v1899 = vsel %vm1889, nan, %v1898
        %v1900 = vand.u32 2147483647, %v346
        %vm1901 = vcmp.le.f32.partialorder %v1900, 0.7853982
        %vm1902 = vcmp.lt.s32.totalorder %v346, 0
        %v1903 = vand.u32 %v346, 2139095040
        %v1904 = vshrl.u32 %v1903, 23
        %v1905 = vsub.s32 %v1904, 127
        %v1906 = vand.u32 2147483647, %v346
        %v1907 = vand.u32 %v1906, 8388607
        %v1908 = vor.u32 %v1907, 8388608
        %v1909 = vsub.s32 0, %v1908
        %v1910 = vadd.s32 %v1905, 1
        %vm1911 = vcmp.gt.s32.totalorder %v1910, 0
        %v1912 = vsel %vm1911, %v1910, 0
        %v1913 = vshrl.u32 %v1912, 5
        %v1914 = vand.u32 %v1912, 31
        %v1915 = vsub.s32 32, %v1914
        %v1916 = vshrl.u32 683565275, %v1915
        %v1917 = vshll.u32 683565275, %v1914
        %v1918 = vshrl.u32 2475754826, %v1915
        %v1919 = vor.u32 %v1917, %v1918
        %v1920 = vshll.u32 2475754826, %v1914
        %v1921 = vshrl.u32 2131351028, %v1915
        %v1922 = vor.u32 %v1920, %v1921
        %v1923 = vshll.u32 2131351028, %v1914
        %v1924 = vshrl.u32 2102212464, %v1915
        %v1925 = vor.u32 %v1923, %v1924
        %v1926 = vshll.u32 2102212464, %v1914
        %v1927 = vshrl.u32 920167782, %v1915
        %v1928 = vor.u32 %v1926, %v1927
        %v1929 = vshll.u32 920167782, %v1914
        %v1930 = vshrl.u32 1326507024, %v1915
        %v1931 = vor.u32 %v1929, %v1930
        %vm1932 = vcmp.lt.s32.totalorder %v1913, 1
        %vm1933 = vcmp.lt.s32.totalorder %v1913, 2
        %vm1934 = vcmp.lt.s32.totalorder %v1913, 3
        %vm1935 = vcmp.lt.s32.totalorder %v1913, 4
        %v1936 = vsel %vm1932, %v1916, %v1919
        %v1937 = vsel %vm1935, %v1925, 2102212464
        %v1938 = vsel %vm1934, %v1922, %v1937
        %v1939 = vsel %vm1933, %v1936, %v1938
        %v1940 = vsel %vm1932, %v1919, %v1922
        %v1941 = vsel %vm1935, %v1928, 920167782
        %v1942 = vsel %vm1934, %v1925, %v1941
        %v1943 = vsel %vm1933, %v1940, %v1942
        %v1944 = vsel %vm1932, %v1922, %v1925
        %v1945 = vsel %vm1935, %v1931, 1326507024
        %v1946 = vsel %vm1934, %v1928, %v1945
        %v1947 = vsel %vm1933, %v1944, %v1946
        %v1948 = vshll.u32 %v1908, 8
        %v1949 = vmul.u32.u64.compose %v1948, %v1947
        %v1950 = vextract.low.u32 %v1949
        %v1951 = vextract.high.u32 %v1949
        %v1952 = vmul.u32.u64.compose %v1948, %v1943
        %v1953 = vextract.low.u32 %v1952
        %v1954 = vextract.high.u32 %v1952
        %v1955 = vmul.u32 %v1948, %v1939
        %v1956 = vadd.s32 %v1951, %v1953
        %vm1957 = vc.u32 %v1951, %v1953
        %v1958 = vadd.s32 %v1954, 1
        %v1959 = vsel %vm1957, %v1958, %v1954
        %v1960 = vadd.s32 %v1955, %v1959
        %v1961 = vadd.s32 %v1960, 536870912
        %v1962 = vshrl.u32 %v1961, 30
        %v1963 = vshll.u32 %v1962, 30
        %v1964 = vsub.s32 %v1960, %v1963
        %vm1965 = vcmp.lt.s32.totalorder %v1964, 0
        %v1966 = vsub.s32 0, %v1964
        %v1967 = vsel %vm1965, %v1966, %v1964
        %v1968 = vclz %v1967
        %v1969 = vsub.s32 %v1968, 2
        %vm1970 = vcmp.gt.s32.totalorder 0, %v1969
        %v1971 = vsel %vm1970, 0, %v1969
        %v1972 = vsub.s32 32, %v1971
        %v1973 = vshll.u32 %v1964, %v1971
        %v1974 = vshrl.u32 %v1956, %v1972
        %v1975 = vor.u32 %v1973, %v1974
        %v1976 = vsub.s32 4294967266, %v1971
        %v1977 = vadd.s32 %v1976, 127
        %v1978 = vshll.u32 %v1977, 23
        %v1979 = vor.u32 4788187, %v1978
        %v1980 = vand.u32 2147483647, %v1979
        %v1982 = vcvt.s32.f32 %v1975
        %v1983 = vmul.f32 %v1982, %v1980
        %v1984 = vxor.u32 %v1983, 2147483648
        %v1985 = vsel %vm1902, %v1984, %v1983
        %v1986 = vsub.s32 4, %v1962
        %v1987 = vsel %vm1902, %v1986, %v1962
        %v1988 = vsel %vm1901, %v346, %v1985
        %v1989 = vsel %vm1901, 0, %v1987
        %v1990 = vcosq.f32.pop %v1988
        %v1991 = vsinq.f32.pop %v1988
        %vm1992 = vweird.f32 %v346
        %v1993 = vand.u32 %v1989, 3
        %vm1994 = vcmp.lt.s32.totalorder %v1993, 2
        %vm1995 = vcmp.eq.s32.totalorder %v1993, 0
        %v1996 = vxor.u32 %v1991, 2147483648
        %v1997 = vsel %vm1995, %v1990, %v1996
        %vm1998 = vcmp.eq.s32.totalorder %v1993, 2
        %v1999 = vxor.u32 %v1990, 2147483648
        %v2000 = vsel %vm1998, %v1999, %v1991
        %v2001 = vsel %vm1994, %v1997, %v2000
        %v2002 = vsel %vm1992, nan, %v2001
        %v2003 = vmul.f32 %v248, %v1281
        %v2004 = vmul.f32 %v253, %v1384
        %v2005 = vmul.f32 %v258, %v1487
        %v2006 = vmul.f32 %v263, %v1590
        %v2007 = vmul.f32 %v268, %v1693
        %v2008 = vmul.f32 %v273, %v1796
        %v2009 = vmul.f32 %v278, %v1899
        %v2010 = vmul.f32 %v283, %v2002
        %v2011 = vld [vmem:[%s3] sm:$0xff]
        %vm2012 = vcmask 523264
        %v2014 = vsel %vm2012, %v2011, 0
        %2016 = vmatprep.subr.mxu0 %v2003
        %2017 = vmatpush1.msra.mxu0 %v450
        %2018 = vmatprep.subr.mxu0 %v2004
        %2019 = vmatpush1.msra.mxu0 %v554
        %2020 = vmatprep.subr.mxu0 %v2005
        %2021 = vmatpush1.msra.mxu0 %v658
        %2022 = vmatprep.subr.mxu0 %v2006
        %2023 = vmatpush1.msra.mxu0 %v762
        %2024 = vmatprep.subr.mxu0 %v2007
        %2025 = vmatpush1.msra.mxu0 %v866
        %2026 = vmatprep.subr.mxu0 %v2008
        %2027 = vmatpush1.msra.mxu0 %v970
        %2028 = vmatprep.subr.mxu0 %v2009
        %2029 = vmatpush1.msra.mxu0 %v1074
        %2030 = vmatprep.subr.mxu0 %v2010
        %2031 = vmatpush1.msra.mxu0 %v1178
        %2032 = vmatprep.subr.mxu0 0.0
        %2033 = vmatpush1.msra.mxu0 0.0
        %2034 = vmatprep.subr.mxu0 0.0
        %2035 = vmatpush1.msra.mxu0 0.0
        %2036 = vmatprep.subr.mxu0 0.0
        %2037 = vmatpush1.msra.mxu0 0.0
        %2038 = vmatprep.subr.mxu0 0.0
        %2039 = vmatpush1.msra.mxu0 0.0
        %2040 = vmatprep.subr.mxu0 0.0
        %2041 = vmatpush1.msra.mxu0 0.0
        %2042 = vmatprep.subr.mxu0 0.0
        %2043 = vmatpush1.msra.mxu0 0.0
        %2044 = vmatprep.subr.mxu0 0.0
        %2045 = vmatpush1.msra.mxu0 0.0
        %2046 = vmatprep.subr.mxu0 0.0
        %2047 = vmatpush1.msra.mxu0 0.0
        %2048 = vmatprep.subr.mxu0 0.0
        %2049 = vmatpush1.msra.mxu0 0.0
        %2050 = vmatprep.subr.mxu0 0.0
        %2051 = vmatpush1.msra.mxu0 0.0
        %2052 = vmatprep.subr.mxu0 0.0
        %2053 = vmatpush1.msra.mxu0 0.0
        %2054 = vmatprep.subr.mxu0 0.0
        %2055 = vmatpush1.msra.mxu0 0.0
        %2056 = vmatprep.subr.mxu0 0.0
        %2057 = vmatpush1.msra.mxu0 0.0
        %2058 = vmatprep.subr.mxu0 0.0
        %2059 = vmatpush1.msra.mxu0 0.0
        %2060 = vmatprep.subr.mxu0 0.0
        %2061 = vmatpush1.msra.mxu0 0.0
        %2062 = vmatprep.subr.mxu0 0.0
        %2063 = vmatpush1.msra.mxu0 0.0
        %2064 = vmatprep.subr.mxu0 0.0
        %2065 = vmatpush1.msra.mxu0 0.0
        %2066 = vmatprep.subr.mxu0 0.0
        %2067 = vmatpush1.msra.mxu0 0.0
        %2068 = vmatprep.subr.mxu0 0.0
        %2069 = vmatpush1.msra.mxu0 0.0
        %2070 = vmatprep.subr.mxu0 0.0
        %2071 = vmatpush1.msra.mxu0 0.0
        %2072 = vmatprep.subr.mxu0 0.0
        %2073 = vmatpush1.msra.mxu0 0.0
        %2074 = vmatprep.subr.mxu0 0.0
        %2075 = vmatpush1.msra.mxu0 0.0
        %2076 = vmatprep.subr.mxu0 0.0
        %2077 = vmatpush1.msra.mxu0 0.0
        %2078 = vmatprep.subr.mxu0 0.0
        %2079 = vmatpush1.msra.mxu0 0.0
        %2080 = vmatprep.mubr.f32.mxu0 0.0
        %2081 = vmatmul.mubr.f32.gmra.mrb[0].mxu0 %v2014
        %v2082 = vpop.f32.mrb[0].mxu0
        %v2083 = vadd.f32 0.0, %v2082
        %v2084 = vpop.f32.mrb[0].mxu0
        %v2085 = vadd.f32 0.0, %v2084
        %2086 = vdwg.mxu0
        %2087 = vst [vmem:[%s217] sm:$0xff] %v2083
        %2088 = vst [vmem:[%s224] sm:$0xff] %v2085
        %s2089 = sand.u32 %s120, 1
        %s2090 = scalar_lea.sflag [#allocation3], %s2089
        %s2091 = sand.u32 %s120, 1
        %s2092 = smul.addr %s2091, 8
        %s2093 = scalar_lea.vmem [#allocation2], %s2092
        %s2094 = sand.u32 %s146, 1
        %s2095 = scalar_lea.sflag [#allocation5], %s2094
        %s2096 = sand.u32 %s146, 1
        %s2097 = smul.addr %s2096, 8
        %s2098 = scalar_lea.vmem [#allocation4], %s2097
        // Predicated region
        $region37: #{tpu_custom_call.1} parent=35 // pred_check
          %p2099 = pneg %p130
        $region38: #{tpu_custom_call.1} parent=35 // pred_check_branch
          %2101 = sbr.rel (%p2099) target = $region40
        $region39: #{tpu_custom_call.1} parent=35 // pred_region
          %s2103 = ssub.s32 128, 128
          %2104 = vsyncadd %s2090, %s2103
          %s2105 = smul.addr %s23, 128
          %s2106 = scalar_lea.hbm %s4, %s2105
          %s2108 = sshll.u32 %s2093, 4
          %s2109 = int_to_ptr.vmem [resolvable:$true] %s2108
          %2111 = dma.vmem_to_hbm [thread:$0]  %s2109, 128, %s2106, %s2090
        $region40: #{tpu_custom_call.1} parent=35 // pred_fallthru
          _
        // Predicated region
        $region41: #{tpu_custom_call.1} parent=35 // pred_check
          %p2112 = pneg %p156
        $region42: #{tpu_custom_call.1} parent=35 // pred_check_branch
          %2114 = sbr.rel (%p2112) target = $region44
        $region43: #{tpu_custom_call.1} parent=35 // pred_region
          %s2116 = ssub.s32 128, 128
          %2117 = vsyncadd %s2095, %s2116
          %s2118 = smul.addr %s23, 128
          %s2119 = scalar_lea.hbm %s5, %s2118
          %s2121 = sshll.u32 %s2098, 4
          %s2122 = int_to_ptr.vmem [resolvable:$true] %s2121
          %2124 = dma.vmem_to_hbm [thread:$0]  %s2122, 128, %s2119, %s2095
        $region44: #{tpu_custom_call.1} parent=35 // pred_fallthru
          _
      $region36: #{tpu_custom_call.1} parent=5 // pred_fallthru
        _
      %p2125 = scmp.le.s32.totalorder 2, %s18
      // Predicated region
      $region45: #{tpu_custom_call.1} parent=5 // pred_check
        %p2126 = pneg %p2125
      $region46: #{tpu_custom_call.1} parent=5 // pred_check_branch
        %2128 = sbr.rel (%p2126) target = $region48
      $region47: #{tpu_custom_call.1} parent=5 // pred_region
        %s2129 = ssub.s32 %s18, 2
        // Predicated region
        $region49: #{tpu_custom_call.1} parent=47 // pred_check
          %p2130 = pneg %p136
        $region50: #{tpu_custom_call.1} parent=47 // pred_check_branch
          %2132 = sbr.rel (%p2130) target = $region52
        $region51: #{tpu_custom_call.1} parent=47 // pred_region
          %s2133 = sand.u32 %s121, 1
          %s2134 = scalar_lea.sflag [#allocation3], %s2133
          %s2135 = sand.u32 %s121, 1
          %s2136 = smul.addr %s2135, 8
          %s2137 = scalar_lea.vmem [#allocation2], %s2136
          %2138 = dma.done %s2134, 128
        $region52: #{tpu_custom_call.1} parent=47 // pred_fallthru
          _
        // Predicated region
        $region53: #{tpu_custom_call.1} parent=47 // pred_check
          %p2139 = pneg %p162
        $region54: #{tpu_custom_call.1} parent=47 // pred_check_branch
          %2141 = sbr.rel (%p2139) target = $region56
        $region55: #{tpu_custom_call.1} parent=47 // pred_region
          %s2142 = sand.u32 %s147, 1
          %s2143 = scalar_lea.sflag [#allocation5], %s2142
          %s2144 = sand.u32 %s147, 1
          %s2145 = smul.addr %s2144, 8
          %s2146 = scalar_lea.vmem [#allocation4], %s2145
          %2147 = dma.done %s2143, 128
        $region56: #{tpu_custom_call.1} parent=47 // pred_fallthru
          _
      $region48: #{tpu_custom_call.1} parent=5 // pred_fallthru
        _
    $region6: #{tpu_custom_call.1} parent=1 // loop_footer
      %s22 = sadd.s32 1, %s18
    $region7: #{tpu_custom_call.1} parent=1 // loop_footer_branch
      %17 = sbr.rel target = $region3
    $region8: #{tpu_custom_call.1} parent=1 // loop_exit
      _
    %2148 = vsyncpa [#allocation3], 1
    %s2149 = scalar_lea.sflag [#allocation3], 1
    %2150 = vsyncpa %s2149, 1
    %2151 = vsyncpa [#allocation5], 1
    %s2152 = scalar_lea.sflag [#allocation5], 1
    %2153 = vsyncpa %s2152, 1

</llo_original>
